<compile_context>
chip_gen: v6e
topology: v6e:2x2x1
jax: 0.10.0
libtpu: 0.0.40
codegen_flags: <defaults>
</compile_context>

<pallas_src>
import functools

import jax
import jax.numpy as jnp
from jax import lax
from jax.experimental import pallas as pl
from jax.experimental.pallas import tpu as pltpu

LOG_STD_MAX = 2.0
LOG_STD_MIN = -20.0


def _ru(v, m):
    return ((v + m - 1) // m) * m


def _encoder_kernel(x_ref, st_ref, w_ref, out_ref, xg_ref, *,
                    D, H, L, RB, offs, BP, S):
    # x_ref  : (S*BP, D)  bf16, time-major, batch padded to BP sublanes
    # st_ref : (2*BP, H)  f32, rows [h0 ; c0]
    # w_ref  : (RB+8, TC) f32 packed slab; column blocks at lane-128-aligned
    #          offsets `offs` = (w1, w_ih, w_hh, w2, heads); bias at row RB.
    # out_ref: (2*BP, OC) f32 lane-dense slab:
    #          cols [0,2L): rows[0:BP)=heads(t=S-2), rows[BP:2BP)=heads(t=S-1)
    #          cols [2L,2L+H): rows[0:BP)=h_N, rows[BP:2BP)=c_N ; rest zero
    # xg_ref : (S*BP, 4H) f32 scratch: input-side gate pre-activations.
    G = 4 * H
    c_w1, c_wih, c_whh, c_w2, c_wh = offs

    # ---- unpack packed weights once (static slices, hoisted) ------------
    w1 = w_ref[0:D, c_w1:c_w1 + H].astype(jnp.bfloat16)
    b1 = w_ref[RB:RB + 1, c_w1:c_w1 + H]
    wih = w_ref[0:H, c_wih:c_wih + G].astype(jnp.bfloat16)
    bsum = w_ref[RB:RB + 1, c_wih:c_wih + G]
    whh = w_ref[0:H, c_whh:c_whh + G]              # f32 on the serial path
    w2 = w_ref[0:H, c_w2:c_w2 + H]
    b2 = w_ref[RB:RB + 1, c_w2:c_w2 + H]
    wh = w_ref[0:H, c_wh:c_wh + 2 * L]
    bh = w_ref[RB:RB + 1, c_wh:c_wh + 2 * L]

    # ---- fc1 + ReLU over every (timestep, batch) row (bf16 MXU feed) ----
    a1 = jnp.maximum(
        jnp.dot(x_ref[...], w1, preferred_element_type=jnp.float32) + b1, 0.0)

    # ---- input-side LSTM gate contribution, batched over all timesteps --
    xg_ref[...] = (jnp.dot(a1.astype(jnp.bfloat16), wih,
                           preferred_element_type=jnp.float32) + bsum)

    h0 = st_ref[0:BP, :]
    c0 = st_ref[BP:2 * BP, :]

    # ---- serial recurrence: only the small (BP,H)x(H,4H) matmul per step
    # TODO(synk): for production H (multiples of the MXU tile) hold W_hh in
    # the MXU staging registers via pltpu.matmul_push_rhs/acc_lhs/pop; jnp.dot
    # is kept here for robustness at arbitrary (small) H.
    def step(t, carry):
        h, c, _ = carry
        row = pl.multiple_of(t * BP, BP)                     # sublane aligned
        g = xg_ref[pl.ds(row, BP), :] + jnp.dot(
            h, whh, preferred_element_type=jnp.float32)      # (BP, 4H)
        sig = jax.nn.sigmoid(g[:, :3 * H])                   # gates [i,f,o|g]
        i_g = sig[:, 0:H]
        f_g = sig[:, H:2 * H]
        o_g = sig[:, 2 * H:3 * H]
        g_g = jnp.tanh(g[:, 3 * H:])
        c_new = f_g * c + i_g * g_g
        h_new = o_g * jnp.tanh(c_new)
        return (h_new, c_new, h)                             # keep h_{t-1}

    h_last, c_last, h_prev = lax.fori_loop(
        0, S, step, (h0, c0, h0), unroll=(S if S <= 8 else 8))

    # ---- fc2 + fused mean/log_std heads on the last two timesteps -------
    last2 = jnp.concatenate([h_prev, h_last], axis=0)        # (2*BP, H)
    a2 = jnp.maximum(
        jnp.dot(last2, w2, preferred_element_type=jnp.float32) + b2, 0.0)
    hd = jnp.dot(a2, wh, preferred_element_type=jnp.float32) + bh  # (2*BP, 2L)
    lane = lax.broadcasted_iota(jnp.int32, hd.shape, 1)
    hd = jnp.where(lane >= L, jnp.clip(hd, LOG_STD_MIN, LOG_STD_MAX), hd)

    # ---- single lane-dense store of [heads | h_N/c_N | pad] -------------
    hc = jnp.concatenate([h_last, c_last], axis=0)           # (2*BP, H)
    pieces = [hd, hc]
    pad_w = out_ref.shape[1] - (2 * L + H)
    if pad_w:
        pieces.append(jnp.zeros((2 * BP, pad_w), jnp.float32))
    out_ref[...] = jnp.concatenate(pieces, axis=1)


def init_params(key, input_dim, latent_dim, hidden_dim, init_w=0.003):
    """Deterministic synthetic parameters with PyTorch-native shapes."""
    ks = jax.random.split(key, 12)
    H, D, L = hidden_dim, input_dim, latent_dim

    def u(k, shape, scale):
        return jax.random.uniform(k, shape, jnp.float32, -scale, scale)

    s_fc1 = 1.0 / jnp.sqrt(D)
    s_fc2 = 1.0 / jnp.sqrt(H)
    s_lstm = 1.0 / jnp.sqrt(H)
    return dict(
        w1=u(ks[0], (H, D), s_fc1),   b1=u(ks[1], (H,), s_fc1),
        w2=u(ks[2], (H, H), s_fc2),   b2=u(ks[3], (H,), s_fc2),
        wm=u(ks[4], (L, H), init_w),  bm=u(ks[5], (L,), init_w),
        wl=u(ks[6], (L, H), init_w),  bl=u(ks[7], (L,), init_w),
        w_ih=u(ks[8], (4 * H, H), s_lstm), b_ih=u(ks[9], (4 * H,), s_lstm),
        w_hh=u(ks[10], (4 * H, H), s_lstm), b_hh=u(ks[11], (4 * H,), s_lstm),
    )


def prepare_params(params):
    """One-time weight prep: transpose, LSTM gate permute [i,f,g,o]->[i,f,o,g],
    head fusion, and packing of all weights/biases into ONE f32 slab with
    lane-128-aligned column blocks and a bias row at sublane RB."""
    H, D = params["w1"].shape
    L = params["wm"].shape[0]

    def reorder(w):          # gate blocks along last axis [i,f,g,o]->[i,f,o,g]
        i_b, f_b, g_b, o_b = jnp.split(w, 4, axis=-1)
        return jnp.concatenate([i_b, f_b, o_b, g_b], axis=-1)

    blocks = [
        (params["w1"].T, params["b1"]),                                 # (D,H)
        (reorder(params["w_ih"].T),
         reorder(params["b_ih"] + params["b_hh"])),                     # (H,4H)
        (reorder(params["w_hh"].T), None),                              # (H,4H)
        (params["w2"].T, params["b2"]),                                 # (H,H)
        (jnp.concatenate([params["wm"].T, params["wl"].T], axis=1),
         jnp.concatenate([params["bm"], params["bl"]])),                # (H,2L)
    ]
    offs, col = [], 0
    for w, _ in blocks:
        offs.append(col)
        col += _ru(w.shape[1], 128)          # lane-align every block start
    RB = _ru(max(D, H), 8)
    slab = jnp.zeros((RB + 8, col), jnp.float32)
    for off, (w, b) in zip(offs, blocks):
        r, k = w.shape
        slab = slab.at[:r, off:off + k].set(w.astype(jnp.float32))
        if b is not None:
            slab = slab.at[RB, off:off + b.shape[0]].set(b.astype(jnp.float32))
    meta = dict(D=D, H=H, L=L, RB=RB, offs=tuple(offs))
    return slab, meta


def recurrent_latent_encoder_forward(x, hidden_in, wslab, *, meta):
    """Matches RecurrentLatentEncoder2head.forward(x, hidden_in)."""
    D, H, L = meta["D"], meta["H"], meta["L"]
    RB, offs = meta["RB"], meta["offs"]
    h0, c0 = hidden_in                        # each (1, B, H)
    B, S, _ = x.shape
    BP = _ru(B, 8)                            # pad batch to sublane multiple
    OC = _ru(2 * L + H, 128)                  # lane-dense packed output width

    # time-major, batch padded, bf16 MXU feed: (S, BP, D) -> (S*BP, D)
    xt = jnp.transpose(x, (1, 0, 2))
    if BP != B:
        xt = jnp.pad(xt, ((0, 0), (0, BP - B), (0, 0)))
    x2 = xt.reshape(S * BP, D).astype(jnp.bfloat16)

    def pad_state(s):                         # (1, B, H) -> (BP, H)
        s2 = s[0].astype(jnp.float32)
        if BP != B:
            s2 = jnp.pad(s2, ((0, BP - B), (0, 0)))
        return s2

    st = jnp.concatenate([pad_state(h0), pad_state(c0)], axis=0)   # (2*BP, H)

    kernel = functools.partial(_encoder_kernel, D=D, H=H, L=L, RB=RB,
                               offs=offs, BP=BP, S=S)

    # advisory cost estimate + explicit scoped-VMEM budget (v5e default 16 MiB)
    flops = (2 * S * BP * (D * H + 2 * H * 4 * H)
             + 2 * (2 * BP) * (H * H + H * 2 * L))
    transc = S * BP * 5 * H
    io_bytes = x2.size * 2 + st.size * 4 + wslab.size * 4 + 2 * BP * OC * 4
    vmem_need = io_bytes + S * BP * 4 * H * 4            # + xg scratch
    vmem_limit = int(min(100 << 20, max(16 << 20, 2 * vmem_need + (1 << 20))))

    vmem = pl.BlockSpec(memory_space=pltpu.MemorySpace.VMEM)
    out = pl.pallas_call(
        kernel,
        out_shape=jax.ShapeDtypeStruct((2 * BP, OC), jnp.float32),
        in_specs=[vmem, vmem, vmem],
        out_specs=vmem,
        scratch_shapes=[pltpu.VMEM((S * BP, 4 * H), jnp.float32)],
        compiler_params=pltpu.CompilerParams(vmem_limit_bytes=vmem_limit),
        cost_estimate=pl.CostEstimate(flops=flops, transcendentals=transc,
                                      bytes_accessed=io_bytes),
        # NOTE(v7x): for large B add a leading batch grid axis marked
        # "parallel" (BP/2 rows per TensorCore); for large S tile the time
        # axis with an "arbitrary" grid axis and per-chunk x / xg blocks.
    )(x2, st, wslab)

    hN = out[0:B, 2 * L:2 * L + H][None]       # (1, B, H)
    cN = out[BP:BP + B, 2 * L:2 * L + H][None]
    heads = out[:, :2 * L]
    if S == 1:                                 # rows [BP:2BP) hold t = S-1
        res = heads[BP:BP + B, :]              # (B, 2L) == cat((mu, ls), dim=1)
    else:
        h2 = heads.reshape(2, BP, 2 * L)[:, :B, :]    # time rows [S-2, S-1]
        mu = jnp.transpose(h2[..., :L], (1, 0, 2))    # (B, 2, L)
        ls = jnp.transpose(h2[..., L:], (1, 0, 2))    # (B, 2, L)
        res = jnp.concatenate([mu, ls], axis=1)       # (B, 4, L)
    return res, (hN, cN)


def reference_forward(x, hidden_in, params):
    """Pure-JAX reference of the PyTorch module (high-precision matmuls)."""
    h0, c0 = hidden_in
    B, S, D = x.shape
    H = params["w1"].shape[0]
    hp = lax.Precision.HIGHEST

    a1 = jax.nn.relu(
        jnp.einsum("bsd,hd->bsh", x, params["w1"], precision=hp) + params["b1"])
    w_ih, w_hh = params["w_ih"], params["w_hh"]
    b = params["b_ih"] + params["b_hh"]

    def step(carry, xt):                      # xt: (B, H)
        h, c = carry
        g = (jnp.dot(xt, w_ih.T, precision=hp)
             + jnp.dot(h, w_hh.T, precision=hp) + b)
        i_g = jax.nn.sigmoid(g[:, :H])
        f_g = jax.nn.sigmoid(g[:, H:2 * H])
        g_g = jnp.tanh(g[:, 2 * H:3 * H])
        o_g = jax.nn.sigmoid(g[:, 3 * H:])
        c = f_g * c + i_g * g_g
        h = o_g * jnp.tanh(c)
        return (h, c), h

    (hN, cN), hs = lax.scan(step, (h0[0], c0[0]), jnp.transpose(a1, (1, 0, 2)))
    hs = jnp.transpose(hs, (1, 0, 2))         # (B, S, H)
    sel = hs[:, -1, :] if S == 1 else hs[:, -2:, :]
    a2 = jax.nn.relu(jnp.dot(sel, params["w2"].T, precision=hp) + params["b2"])
    mu = jnp.dot(a2, params["wm"].T, precision=hp) + params["bm"]
    ls = jnp.clip(jnp.dot(a2, params["wl"].T, precision=hp) + params["bl"],
                  LOG_STD_MIN, LOG_STD_MAX)
    return jnp.concatenate([mu, ls], axis=1), (hN[None], cN[None])


if __name__ == "__main__":
    key = jax.random.PRNGKey(0)
    k_par, k_x, k_h, k_c = jax.random.split(key, 4)

    batch, seq = 2, 8
    input_dim, hidden_dim, latent_dim = 20, 32, 8

    params = init_params(k_par, input_dim, latent_dim, hidden_dim)
    wslab, meta = prepare_params(params)          # one-time weight packing

    x = jax.random.normal(k_x, (batch, seq, input_dim), jnp.float32)
    h0 = 0.1 * jax.random.normal(k_h, (1, batch, hidden_dim), jnp.float32)
    c0 = 0.1 * jax.random.normal(k_c, (1, batch, hidden_dim), jnp.float32)

    fwd = jax.jit(functools.partial(recurrent_latent_encoder_forward, meta=meta))

    # seq > 1 branch
    out, (hN, cN) = fwd(x, (h0, c0), wslab)
    jax.block_until_ready((out, hN, cN))
    assert out.shape == (batch, 4, latent_dim)    # cat((mu, ls), dim=1)
    assert hN.shape == (1, batch, hidden_dim)
    assert cN.shape == (1, batch, hidden_dim)

    ref_out, (ref_h, ref_c) = reference_forward(x, (h0, c0), params)
    for name, a, b in (("out", out, ref_out), ("hN", hN, ref_h), ("cN", cN, ref_c)):
        err = float(jnp.max(jnp.abs(a - b)))
        assert err < 2e-2, f"{name} mismatch: max abs err {err}"

    # seq == 1 branch
    x1 = x[:, :1, :]
    out1, (hN1, cN1) = fwd(x1, (h0, c0), wslab)
    jax.block_until_ready((out1, hN1, cN1))
    assert out1.shape == (batch, 2 * latent_dim)
    r_out1, (r_h1, r_c1) = reference_forward(x1, (h0, c0), params)
    for name, a, b in (("out1", out1, r_out1), ("hN1", hN1, r_h1),
                       ("cN1", cN1, r_c1)):
        err = float(jnp.max(jnp.abs(a - b)))
        assert err < 2e-2, f"{name} mismatch: max abs err {err}"

    print("KERNEL_OK")
</pallas_src>

<mosaic_0001>
module attributes {stable_mosaic.version = 11 : i64} {
  func.func @_encoder_kernel(%arg0: memref<64x20xbf16, #tpu.memory_space<vmem>>, %arg1: memref<16x32xf32, #tpu.memory_space<vmem>>, %arg2: memref<40x640xf32, #tpu.memory_space<vmem>>, %arg3: memref<16x128xf32, #tpu.memory_space<vmem>>, %arg4: memref<64x128xf32, #tpu.memory_space<vmem>>) attributes {dimension_semantics = [], scalar_prefetch = 0 : i64, scratch_operands = 1 : i64, tpu.core_type = #tpu.core_type<tc>} {
    %c0 = arith.constant 0 : index
    %c0_0 = arith.constant 0 : index
    %0 = vector.load %arg2[%c0, %c0_0] : memref<40x640xf32, #tpu.memory_space<vmem>>, vector<20x32xf32>
    %1 = arith.truncf %0 : vector<20x32xf32> to vector<20x32xbf16>
    %c32 = arith.constant 32 : index
    %c0_1 = arith.constant 0 : index
    %2 = vector.load %arg2[%c32, %c0_1] : memref<40x640xf32, #tpu.memory_space<vmem>>, vector<1x32xf32>
    %c0_2 = arith.constant 0 : index
    %c128 = arith.constant 128 : index
    %3 = vector.load %arg2[%c0_2, %c128] : memref<40x640xf32, #tpu.memory_space<vmem>>, vector<32x128xf32>
    %4 = arith.truncf %3 : vector<32x128xf32> to vector<32x128xbf16>
    %c32_3 = arith.constant 32 : index
    %c128_4 = arith.constant 128 : index
    %5 = vector.load %arg2[%c32_3, %c128_4] : memref<40x640xf32, #tpu.memory_space<vmem>>, vector<1x128xf32>
    %c0_5 = arith.constant 0 : index
    %c256 = arith.constant 256 : index
    %6 = vector.load %arg2[%c0_5, %c256] : memref<40x640xf32, #tpu.memory_space<vmem>>, vector<32x128xf32>
    %c0_6 = arith.constant 0 : index
    %c384 = arith.constant 384 : index
    %7 = vector.load %arg2[%c0_6, %c384] : memref<40x640xf32, #tpu.memory_space<vmem>>, vector<32x32xf32>
    %c32_7 = arith.constant 32 : index
    %c384_8 = arith.constant 384 : index
    %8 = vector.load %arg2[%c32_7, %c384_8] : memref<40x640xf32, #tpu.memory_space<vmem>>, vector<1x32xf32>
    %c0_9 = arith.constant 0 : index
    %c512 = arith.constant 512 : index
    %9 = vector.load %arg2[%c0_9, %c512] : memref<40x640xf32, #tpu.memory_space<vmem>>, vector<32x16xf32>
    %c32_10 = arith.constant 32 : index
    %c512_11 = arith.constant 512 : index
    %10 = vector.load %arg2[%c32_10, %c512_11] : memref<40x640xf32, #tpu.memory_space<vmem>>, vector<1x16xf32>
    %c0_12 = arith.constant 0 : index
    %c0_13 = arith.constant 0 : index
    %11 = vector.load %arg0[%c0_12, %c0_13] : memref<64x20xbf16, #tpu.memory_space<vmem>>, vector<64x20xbf16>
    %cst = arith.constant dense<0.000000e+00> : vector<64x32xf32>
    %12 = tpu.matmul %11, %1, %cst {dimension_numbers = #tpu.dot_dimension_numbers<[1], [0], [0], [1], [0, 0, 1, 1], [], []>} : vector<64x20xbf16>, vector<20x32xbf16>, vector<64x32xf32> -> vector<64x32xf32>
    %13 = vector.broadcast %2 : vector<1x32xf32> to vector<64x32xf32>
    %14 = arith.addf %12, %13 : vector<64x32xf32>
    %cst_14 = arith.constant 0.000000e+00 : f32
    %15 = vector.broadcast %cst_14 : f32 to vector<64x32xf32>
    %16 = arith.maximumf %14, %15 : vector<64x32xf32>
    %17 = arith.truncf %16 : vector<64x32xf32> to vector<64x32xbf16>
    %cst_15 = arith.constant dense<0.000000e+00> : vector<64x128xf32>
    %18 = tpu.matmul %17, %4, %cst_15 {dimension_numbers = #tpu.dot_dimension_numbers<[1], [0], [0], [1], [0, 0, 1, 1], [], []>} : vector<64x32xbf16>, vector<32x128xbf16>, vector<64x128xf32> -> vector<64x128xf32>
    %19 = vector.broadcast %5 : vector<1x128xf32> to vector<64x128xf32>
    %20 = arith.addf %18, %19 : vector<64x128xf32>
    %c0_16 = arith.constant 0 : index
    %c0_17 = arith.constant 0 : index
    %21 = vector.load %arg4[%c0_16, %c0_17] : memref<64x128xf32, #tpu.memory_space<vmem>>, vector<64x128xf32>
    tpu.vector_store %arg4[%c0_16, %c0_17], %20 {strides = array<i32>} : memref<64x128xf32, #tpu.memory_space<vmem>>, vector<64x128xf32>,
    %c0_18 = arith.constant 0 : index
    %c0_19 = arith.constant 0 : index
    %22 = vector.load %arg1[%c0_18, %c0_19] : memref<16x32xf32, #tpu.memory_space<vmem>>, vector<8x32xf32>
    %c8 = arith.constant 8 : index
    %c0_20 = arith.constant 0 : index
    %23 = vector.load %arg1[%c8, %c0_20] : memref<16x32xf32, #tpu.memory_space<vmem>>, vector<8x32xf32>
    %c0_i32 = arith.constant 0 : i32
    %c8_i32 = arith.constant 8 : i32
    %24 = arith.muli %c0_i32, %c8_i32 : i32
    %25 = tpu.assume_multiple %24, 8 : i32
    %26 = arith.index_cast %25 : i32 to index
    %c0_21 = arith.constant 0 : index
    %27 = vector.load %arg4[%26, %c0_21] : memref<64x128xf32, #tpu.memory_space<vmem>>, vector<8x128xf32>
    %cst_22 = arith.constant dense<0.000000e+00> : vector<8x128xf32>
    %28 = tpu.matmul %22, %6, %cst_22 {dimension_numbers = #tpu.dot_dimension_numbers<[1], [0], [0], [1], [0, 0, 1, 1], [], []>} : vector<8x32xf32>, vector<32x128xf32>, vector<8x128xf32> -> vector<8x128xf32>
    %29 = arith.addf %27, %28 : vector<8x128xf32>
    %30 = vector.extract_strided_slice %29 {offsets = [0, 0], sizes = [8, 96], strides = [1, 1]} : vector<8x128xf32> to vector<8x96xf32>
    %31 = arith.negf %30 : vector<8x96xf32>
    %32 = math.exp %31 : vector<8x96xf32>
    %cst_23 = arith.constant 1.000000e+00 : f32
    %33 = vector.broadcast %cst_23 : f32 to vector<8x96xf32>
    %34 = arith.addf %33, %32 : vector<8x96xf32>
    %35 = arith.divf %33, %34 : vector<8x96xf32>
    %36 = vector.extract_strided_slice %35 {offsets = [0, 0], sizes = [8, 32], strides = [1, 1]} : vector<8x96xf32> to vector<8x32xf32>
    %37 = vector.extract_strided_slice %35 {offsets = [0, 32], sizes = [8, 32], strides = [1, 1]} : vector<8x96xf32> to vector<8x32xf32>
    %38 = vector.extract_strided_slice %35 {offsets = [0, 64], sizes = [8, 32], strides = [1, 1]} : vector<8x96xf32> to vector<8x32xf32>
    %39 = vector.extract_strided_slice %29 {offsets = [0, 96], sizes = [8, 32], strides = [1, 1]} : vector<8x128xf32> to vector<8x32xf32>
    %40 = math.tanh %39 : vector<8x32xf32>
    %41 = arith.mulf %37, %23 : vector<8x32xf32>
    %42 = arith.mulf %36, %40 : vector<8x32xf32>
    %43 = arith.addf %41, %42 : vector<8x32xf32>
    %44 = math.tanh %43 : vector<8x32xf32>
    %45 = arith.mulf %38, %44 : vector<8x32xf32>
    %c1_i32 = arith.constant 1 : i32
    %c8_i32_24 = arith.constant 8 : i32
    %46 = arith.muli %c1_i32, %c8_i32_24 : i32
    %47 = tpu.assume_multiple %46, 8 : i32
    %48 = arith.index_cast %47 : i32 to index
    %c0_25 = arith.constant 0 : index
    %49 = vector.load %arg4[%48, %c0_25] : memref<64x128xf32, #tpu.memory_space<vmem>>, vector<8x128xf32>
    %cst_26 = arith.constant dense<0.000000e+00> : vector<8x128xf32>
    %50 = tpu.matmul %45, %6, %cst_26 {dimension_numbers = #tpu.dot_dimension_numbers<[1], [0], [0], [1], [0, 0, 1, 1], [], []>} : vector<8x32xf32>, vector<32x128xf32>, vector<8x128xf32> -> vector<8x128xf32>
    %51 = arith.addf %49, %50 : vector<8x128xf32>
    %52 = vector.extract_strided_slice %51 {offsets = [0, 0], sizes = [8, 96], strides = [1, 1]} : vector<8x128xf32> to vector<8x96xf32>
    %53 = arith.negf %52 : vector<8x96xf32>
    %54 = math.exp %53 : vector<8x96xf32>
    %cst_27 = arith.constant 1.000000e+00 : f32
    %55 = vector.broadcast %cst_27 : f32 to vector<8x96xf32>
    %56 = arith.addf %55, %54 : vector<8x96xf32>
    %57 = arith.divf %55, %56 : vector<8x96xf32>
    %58 = vector.extract_strided_slice %57 {offsets = [0, 0], sizes = [8, 32], strides = [1, 1]} : vector<8x96xf32> to vector<8x32xf32>
    %59 = vector.extract_strided_slice %57 {offsets = [0, 32], sizes = [8, 32], strides = [1, 1]} : vector<8x96xf32> to vector<8x32xf32>
    %60 = vector.extract_strided_slice %57 {offsets = [0, 64], sizes = [8, 32], strides = [1, 1]} : vector<8x96xf32> to vector<8x32xf32>
    %61 = vector.extract_strided_slice %51 {offsets = [0, 96], sizes = [8, 32], strides = [1, 1]} : vector<8x128xf32> to vector<8x32xf32>
    %62 = math.tanh %61 : vector<8x32xf32>
    %63 = arith.mulf %59, %43 : vector<8x32xf32>
    %64 = arith.mulf %58, %62 : vector<8x32xf32>
    %65 = arith.addf %63, %64 : vector<8x32xf32>
    %66 = math.tanh %65 : vector<8x32xf32>
    %67 = arith.mulf %60, %66 : vector<8x32xf32>
    %c2_i32 = arith.constant 2 : i32
    %c8_i32_28 = arith.constant 8 : i32
    %68 = arith.muli %c2_i32, %c8_i32_28 : i32
    %69 = tpu.assume_multiple %68, 8 : i32
    %70 = arith.index_cast %69 : i32 to index
    %c0_29 = arith.constant 0 : index
    %71 = vector.load %arg4[%70, %c0_29] : memref<64x128xf32, #tpu.memory_space<vmem>>, vector<8x128xf32>
    %cst_30 = arith.constant dense<0.000000e+00> : vector<8x128xf32>
    %72 = tpu.matmul %67, %6, %cst_30 {dimension_numbers = #tpu.dot_dimension_numbers<[1], [0], [0], [1], [0, 0, 1, 1], [], []>} : vector<8x32xf32>, vector<32x128xf32>, vector<8x128xf32> -> vector<8x128xf32>
    %73 = arith.addf %71, %72 : vector<8x128xf32>
    %74 = vector.extract_strided_slice %73 {offsets = [0, 0], sizes = [8, 96], strides = [1, 1]} : vector<8x128xf32> to vector<8x96xf32>
    %75 = arith.negf %74 : vector<8x96xf32>
    %76 = math.exp %75 : vector<8x96xf32>
    %cst_31 = arith.constant 1.000000e+00 : f32
    %77 = vector.broadcast %cst_31 : f32 to vector<8x96xf32>
    %78 = arith.addf %77, %76 : vector<8x96xf32>
    %79 = arith.divf %77, %78 : vector<8x96xf32>
    %80 = vector.extract_strided_slice %79 {offsets = [0, 0], sizes = [8, 32], strides = [1, 1]} : vector<8x96xf32> to vector<8x32xf32>
    %81 = vector.extract_strided_slice %79 {offsets = [0, 32], sizes = [8, 32], strides = [1, 1]} : vector<8x96xf32> to vector<8x32xf32>
    %82 = vector.extract_strided_slice %79 {offsets = [0, 64], sizes = [8, 32], strides = [1, 1]} : vector<8x96xf32> to vector<8x32xf32>
    %83 = vector.extract_strided_slice %73 {offsets = [0, 96], sizes = [8, 32], strides = [1, 1]} : vector<8x128xf32> to vector<8x32xf32>
    %84 = math.tanh %83 : vector<8x32xf32>
    %85 = arith.mulf %81, %65 : vector<8x32xf32>
    %86 = arith.mulf %80, %84 : vector<8x32xf32>
    %87 = arith.addf %85, %86 : vector<8x32xf32>
    %88 = math.tanh %87 : vector<8x32xf32>
    %89 = arith.mulf %82, %88 : vector<8x32xf32>
    %c3_i32 = arith.constant 3 : i32
    %c8_i32_32 = arith.constant 8 : i32
    %90 = arith.muli %c3_i32, %c8_i32_32 : i32
    %91 = tpu.assume_multiple %90, 8 : i32
    %92 = arith.index_cast %91 : i32 to index
    %c0_33 = arith.constant 0 : index
    %93 = vector.load %arg4[%92, %c0_33] : memref<64x128xf32, #tpu.memory_space<vmem>>, vector<8x128xf32>
    %cst_34 = arith.constant dense<0.000000e+00> : vector<8x128xf32>
    %94 = tpu.matmul %89, %6, %cst_34 {dimension_numbers = #tpu.dot_dimension_numbers<[1], [0], [0], [1], [0, 0, 1, 1], [], []>} : vector<8x32xf32>, vector<32x128xf32>, vector<8x128xf32> -> vector<8x128xf32>
    %95 = arith.addf %93, %94 : vector<8x128xf32>
    %96 = vector.extract_strided_slice %95 {offsets = [0, 0], sizes = [8, 96], strides = [1, 1]} : vector<8x128xf32> to vector<8x96xf32>
    %97 = arith.negf %96 : vector<8x96xf32>
    %98 = math.exp %97 : vector<8x96xf32>
    %cst_35 = arith.constant 1.000000e+00 : f32
    %99 = vector.broadcast %cst_35 : f32 to vector<8x96xf32>
    %100 = arith.addf %99, %98 : vector<8x96xf32>
    %101 = arith.divf %99, %100 : vector<8x96xf32>
    %102 = vector.extract_strided_slice %101 {offsets = [0, 0], sizes = [8, 32], strides = [1, 1]} : vector<8x96xf32> to vector<8x32xf32>
    %103 = vector.extract_strided_slice %101 {offsets = [0, 32], sizes = [8, 32], strides = [1, 1]} : vector<8x96xf32> to vector<8x32xf32>
    %104 = vector.extract_strided_slice %101 {offsets = [0, 64], sizes = [8, 32], strides = [1, 1]} : vector<8x96xf32> to vector<8x32xf32>
    %105 = vector.extract_strided_slice %95 {offsets = [0, 96], sizes = [8, 32], strides = [1, 1]} : vector<8x128xf32> to vector<8x32xf32>
    %106 = math.tanh %105 : vector<8x32xf32>
    %107 = arith.mulf %103, %87 : vector<8x32xf32>
    %108 = arith.mulf %102, %106 : vector<8x32xf32>
    %109 = arith.addf %107, %108 : vector<8x32xf32>
    %110 = math.tanh %109 : vector<8x32xf32>
    %111 = arith.mulf %104, %110 : vector<8x32xf32>
    %c4_i32 = arith.constant 4 : i32
    %c8_i32_36 = arith.constant 8 : i32
    %112 = arith.muli %c4_i32, %c8_i32_36 : i32
    %113 = tpu.assume_multiple %112, 8 : i32
    %114 = arith.index_cast %113 : i32 to index
    %c0_37 = arith.constant 0 : index
    %115 = vector.load %arg4[%114, %c0_37] : memref<64x128xf32, #tpu.memory_space<vmem>>, vector<8x128xf32>
    %cst_38 = arith.constant dense<0.000000e+00> : vector<8x128xf32>
    %116 = tpu.matmul %111, %6, %cst_38 {dimension_numbers = #tpu.dot_dimension_numbers<[1], [0], [0], [1], [0, 0, 1, 1], [], []>} : vector<8x32xf32>, vector<32x128xf32>, vector<8x128xf32> -> vector<8x128xf32>
    %117 = arith.addf %115, %116 : vector<8x128xf32>
    %118 = vector.extract_strided_slice %117 {offsets = [0, 0], sizes = [8, 96], strides = [1, 1]} : vector<8x128xf32> to vector<8x96xf32>
    %119 = arith.negf %118 : vector<8x96xf32>
    %120 = math.exp %119 : vector<8x96xf32>
    %cst_39 = arith.constant 1.000000e+00 : f32
    %121 = vector.broadcast %cst_39 : f32 to vector<8x96xf32>
    %122 = arith.addf %121, %120 : vector<8x96xf32>
    %123 = arith.divf %121, %122 : vector<8x96xf32>
    %124 = vector.extract_strided_slice %123 {offsets = [0, 0], sizes = [8, 32], strides = [1, 1]} : vector<8x96xf32> to vector<8x32xf32>
    %125 = vector.extract_strided_slice %123 {offsets = [0, 32], sizes = [8, 32], strides = [1, 1]} : vector<8x96xf32> to vector<8x32xf32>
    %126 = vector.extract_strided_slice %123 {offsets = [0, 64], sizes = [8, 32], strides = [1, 1]} : vector<8x96xf32> to vector<8x32xf32>
    %127 = vector.extract_strided_slice %117 {offsets = [0, 96], sizes = [8, 32], strides = [1, 1]} : vector<8x128xf32> to vector<8x32xf32>
    %128 = math.tanh %127 : vector<8x32xf32>
    %129 = arith.mulf %125, %109 : vector<8x32xf32>
    %130 = arith.mulf %124, %128 : vector<8x32xf32>
    %131 = arith.addf %129, %130 : vector<8x32xf32>
    %132 = math.tanh %131 : vector<8x32xf32>
    %133 = arith.mulf %126, %132 : vector<8x32xf32>
    %c5_i32 = arith.constant 5 : i32
    %c8_i32_40 = arith.constant 8 : i32
    %134 = arith.muli %c5_i32, %c8_i32_40 : i32
    %135 = tpu.assume_multiple %134, 8 : i32
    %136 = arith.index_cast %135 : i32 to index
    %c0_41 = arith.constant 0 : index
    %137 = vector.load %arg4[%136, %c0_41] : memref<64x128xf32, #tpu.memory_space<vmem>>, vector<8x128xf32>
    %cst_42 = arith.constant dense<0.000000e+00> : vector<8x128xf32>
    %138 = tpu.matmul %133, %6, %cst_42 {dimension_numbers = #tpu.dot_dimension_numbers<[1], [0], [0], [1], [0, 0, 1, 1], [], []>} : vector<8x32xf32>, vector<32x128xf32>, vector<8x128xf32> -> vector<8x128xf32>
    %139 = arith.addf %137, %138 : vector<8x128xf32>
    %140 = vector.extract_strided_slice %139 {offsets = [0, 0], sizes = [8, 96], strides = [1, 1]} : vector<8x128xf32> to vector<8x96xf32>
    %141 = arith.negf %140 : vector<8x96xf32>
    %142 = math.exp %141 : vector<8x96xf32>
    %cst_43 = arith.constant 1.000000e+00 : f32
    %143 = vector.broadcast %cst_43 : f32 to vector<8x96xf32>
    %144 = arith.addf %143, %142 : vector<8x96xf32>
    %145 = arith.divf %143, %144 : vector<8x96xf32>
    %146 = vector.extract_strided_slice %145 {offsets = [0, 0], sizes = [8, 32], strides = [1, 1]} : vector<8x96xf32> to vector<8x32xf32>
    %147 = vector.extract_strided_slice %145 {offsets = [0, 32], sizes = [8, 32], strides = [1, 1]} : vector<8x96xf32> to vector<8x32xf32>
    %148 = vector.extract_strided_slice %145 {offsets = [0, 64], sizes = [8, 32], strides = [1, 1]} : vector<8x96xf32> to vector<8x32xf32>
    %149 = vector.extract_strided_slice %139 {offsets = [0, 96], sizes = [8, 32], strides = [1, 1]} : vector<8x128xf32> to vector<8x32xf32>
    %150 = math.tanh %149 : vector<8x32xf32>
    %151 = arith.mulf %147, %131 : vector<8x32xf32>
    %152 = arith.mulf %146, %150 : vector<8x32xf32>
    %153 = arith.addf %151, %152 : vector<8x32xf32>
    %154 = math.tanh %153 : vector<8x32xf32>
    %155 = arith.mulf %148, %154 : vector<8x32xf32>
    %c6_i32 = arith.constant 6 : i32
    %c8_i32_44 = arith.constant 8 : i32
    %156 = arith.muli %c6_i32, %c8_i32_44 : i32
    %157 = tpu.assume_multiple %156, 8 : i32
    %158 = arith.index_cast %157 : i32 to index
    %c0_45 = arith.constant 0 : index
    %159 = vector.load %arg4[%158, %c0_45] : memref<64x128xf32, #tpu.memory_space<vmem>>, vector<8x128xf32>
    %cst_46 = arith.constant dense<0.000000e+00> : vector<8x128xf32>
    %160 = tpu.matmul %155, %6, %cst_46 {dimension_numbers = #tpu.dot_dimension_numbers<[1], [0], [0], [1], [0, 0, 1, 1], [], []>} : vector<8x32xf32>, vector<32x128xf32>, vector<8x128xf32> -> vector<8x128xf32>
    %161 = arith.addf %159, %160 : vector<8x128xf32>
    %162 = vector.extract_strided_slice %161 {offsets = [0, 0], sizes = [8, 96], strides = [1, 1]} : vector<8x128xf32> to vector<8x96xf32>
    %163 = arith.negf %162 : vector<8x96xf32>
    %164 = math.exp %163 : vector<8x96xf32>
    %cst_47 = arith.constant 1.000000e+00 : f32
    %165 = vector.broadcast %cst_47 : f32 to vector<8x96xf32>
    %166 = arith.addf %165, %164 : vector<8x96xf32>
    %167 = arith.divf %165, %166 : vector<8x96xf32>
    %168 = vector.extract_strided_slice %167 {offsets = [0, 0], sizes = [8, 32], strides = [1, 1]} : vector<8x96xf32> to vector<8x32xf32>
    %169 = vector.extract_strided_slice %167 {offsets = [0, 32], sizes = [8, 32], strides = [1, 1]} : vector<8x96xf32> to vector<8x32xf32>
    %170 = vector.extract_strided_slice %167 {offsets = [0, 64], sizes = [8, 32], strides = [1, 1]} : vector<8x96xf32> to vector<8x32xf32>
    %171 = vector.extract_strided_slice %161 {offsets = [0, 96], sizes = [8, 32], strides = [1, 1]} : vector<8x128xf32> to vector<8x32xf32>
    %172 = math.tanh %171 : vector<8x32xf32>
    %173 = arith.mulf %169, %153 : vector<8x32xf32>
    %174 = arith.mulf %168, %172 : vector<8x32xf32>
    %175 = arith.addf %173, %174 : vector<8x32xf32>
    %176 = math.tanh %175 : vector<8x32xf32>
    %177 = arith.mulf %170, %176 : vector<8x32xf32>
    %c7_i32 = arith.constant 7 : i32
    %c8_i32_48 = arith.constant 8 : i32
    %178 = arith.muli %c7_i32, %c8_i32_48 : i32
    %179 = tpu.assume_multiple %178, 8 : i32
    %180 = arith.index_cast %179 : i32 to index
    %c0_49 = arith.constant 0 : index
    %181 = vector.load %arg4[%180, %c0_49] : memref<64x128xf32, #tpu.memory_space<vmem>>, vector<8x128xf32>
    %cst_50 = arith.constant dense<0.000000e+00> : vector<8x128xf32>
    %182 = tpu.matmul %177, %6, %cst_50 {dimension_numbers = #tpu.dot_dimension_numbers<[1], [0], [0], [1], [0, 0, 1, 1], [], []>} : vector<8x32xf32>, vector<32x128xf32>, vector<8x128xf32> -> vector<8x128xf32>
    %183 = arith.addf %181, %182 : vector<8x128xf32>
    %184 = vector.extract_strided_slice %183 {offsets = [0, 0], sizes = [8, 96], strides = [1, 1]} : vector<8x128xf32> to vector<8x96xf32>
    %185 = arith.negf %184 : vector<8x96xf32>
    %186 = math.exp %185 : vector<8x96xf32>
    %cst_51 = arith.constant 1.000000e+00 : f32
    %187 = vector.broadcast %cst_51 : f32 to vector<8x96xf32>
    %188 = arith.addf %187, %186 : vector<8x96xf32>
    %189 = arith.divf %187, %188 : vector<8x96xf32>
    %190 = vector.extract_strided_slice %189 {offsets = [0, 0], sizes = [8, 32], strides = [1, 1]} : vector<8x96xf32> to vector<8x32xf32>
    %191 = vector.extract_strided_slice %189 {offsets = [0, 32], sizes = [8, 32], strides = [1, 1]} : vector<8x96xf32> to vector<8x32xf32>
    %192 = vector.extract_strided_slice %189 {offsets = [0, 64], sizes = [8, 32], strides = [1, 1]} : vector<8x96xf32> to vector<8x32xf32>
    %193 = vector.extract_strided_slice %183 {offsets = [0, 96], sizes = [8, 32], strides = [1, 1]} : vector<8x128xf32> to vector<8x32xf32>
    %194 = math.tanh %193 : vector<8x32xf32>
    %195 = arith.mulf %191, %175 : vector<8x32xf32>
    %196 = arith.mulf %190, %194 : vector<8x32xf32>
    %197 = arith.addf %195, %196 : vector<8x32xf32>
    %198 = math.tanh %197 : vector<8x32xf32>
    %199 = arith.mulf %192, %198 : vector<8x32xf32>
    %c8_i32_52 = arith.constant 8 : i32
    %200 = tpu.concatenate %177, %199 in 0 : vector<8x32xf32>, vector<8x32xf32> -> vector<16x32xf32>
    %cst_53 = arith.constant dense<0.000000e+00> : vector<16x32xf32>
    %201 = tpu.matmul %200, %7, %cst_53 {dimension_numbers = #tpu.dot_dimension_numbers<[1], [0], [0], [1], [0, 0, 1, 1], [], []>} : vector<16x32xf32>, vector<32x32xf32>, vector<16x32xf32> -> vector<16x32xf32>
    %202 = vector.broadcast %8 : vector<1x32xf32> to vector<16x32xf32>
    %203 = arith.addf %201, %202 : vector<16x32xf32>
    %cst_54 = arith.constant 0.000000e+00 : f32
    %204 = vector.broadcast %cst_54 : f32 to vector<16x32xf32>
    %205 = arith.maximumf %203, %204 : vector<16x32xf32>
    %cst_55 = arith.constant dense<0.000000e+00> : vector<16x16xf32>
    %206 = tpu.matmul %205, %9, %cst_55 {dimension_numbers = #tpu.dot_dimension_numbers<[1], [0], [0], [1], [0, 0, 1, 1], [], []>} : vector<16x32xf32>, vector<32x16xf32>, vector<16x16xf32> -> vector<16x16xf32>
    %207 = vector.broadcast %10 : vector<1x16xf32> to vector<16x16xf32>
    %208 = arith.addf %206, %207 : vector<16x16xf32>
    %209 = tpu.iota {dimensions = array<i32: 1>} : vector<16x16xi32>
    %c8_i32_56 = arith.constant 8 : i32
    %210 = vector.broadcast %c8_i32_56 : i32 to vector<16x16xi32>
    %211 = arith.cmpi sge, %209, %210 : vector<16x16xi32>
    %cst_57 = arith.constant -2.000000e+01 : f32
    %cst_58 = arith.constant 2.000000e+00 : f32
    %212 = vector.broadcast %cst_57 : f32 to vector<16x16xf32>
    %213 = arith.maximumf %212, %208 : vector<16x16xf32>
    %214 = vector.broadcast %cst_58 : f32 to vector<16x16xf32>
    %215 = arith.minimumf %214, %213 : vector<16x16xf32>
    %216 = arith.select %211, %215, %208 : vector<16x16xi1>, vector<16x16xf32>
    %217 = tpu.concatenate %199, %197 in 0 : vector<8x32xf32>, vector<8x32xf32> -> vector<16x32xf32>
    %cst_59 = arith.constant 0.000000e+00 : f32
    %218 = vector.broadcast %cst_59 : f32 to vector<16x80xf32>
    %219 = tpu.concatenate %216, %217, %218 in 1 : vector<16x16xf32>, vector<16x32xf32>, vector<16x80xf32> -> vector<16x128xf32>
    %c0_60 = arith.constant 0 : index
    %c0_61 = arith.constant 0 : index
    %220 = vector.load %arg3[%c0_60, %c0_61] : memref<16x128xf32, #tpu.memory_space<vmem>>, vector<16x128xf32>
    tpu.vector_store %arg3[%c0_60, %c0_61], %219 {strides = array<i32>} : memref<16x128xf32, #tpu.memory_space<vmem>>, vector<16x128xf32>,
    return
  }
}

</mosaic_0001>

<llo_original>
// kernel: recurrent_latent_encoder_forward.1
$region0: #{recurrent_latent_encoder_forward.1}
  #allocation0 [shape = 'u32[]', space=smem, size = 0x4, offset = 0x4, fixed_abs, tag = 'smem constant byte address 0x4 - core index']
  #allocation1 [shape = 'u32[144,128]{1,0:T(1,128)}', space=vmem, size = 0x12000, scoped, tag = 'internal scratch']
  #allocation2 [shape = 'f32[64,128]{1,0:T(8,128)}', space=vmem, size = 0x8000, scoped, tag = 'scratch operand']
  %s0 = inlined_call_operand.vmem [shape: bf16[64,20], index: 0, kind: input, shape index: {}]
  %s1 = inlined_call_operand.vmem [shape: f32[16,32], index: 1, kind: input, shape index: {}]
  %s2 = inlined_call_operand.hbm [shape: f32[40,640], index: 2, kind: input, shape index: {}]
  %s3 = inlined_call_operand.vmem [shape: f32[16,128], index: 3, kind: output, shape index: {}]
  %s4 = sld [smem:[#allocation0]]
  $region26: #{recurrent_latent_encoder_forward.1} parent=0
    _
  %s6 = ssub.s32 1, %s4
  %s7 = scalar_select 0, %s6, %s4
  $region1: #{recurrent_latent_encoder_forward.1} parent=0
    #allocation3 [shape = 'u8[102400]{0}', space=vmem, size = 0x19000, scoped, tag = 'input window, operand 2, single buffered']
    #allocation4 [shape = 's32[1]{0}', space=sflag, size = 0x4, scoped, tag = 'scoped memory for recurrent_latent_encoder_forward.1']
    %8 = vsyncpa [#allocation4], 0
    // Predicated region
    $region2: #{recurrent_latent_encoder_forward.1} parent=1 // pred_check
      _
    $region3: #{recurrent_latent_encoder_forward.1} parent=1 // pred_check_branch
      %10 = sbr.rel (0) target = $region5
    $region4: #{recurrent_latent_encoder_forward.1} parent=1 // pred_region
      _
    $region5: #{recurrent_latent_encoder_forward.1} parent=1 // pred_fallthru
      _
    // Predicated region
    $region6: #{recurrent_latent_encoder_forward.1} parent=1 // pred_check
      _
    $region7: #{recurrent_latent_encoder_forward.1} parent=1 // pred_check_branch
      %12 = sbr.rel (0) target = $region9
    $region8: #{recurrent_latent_encoder_forward.1} parent=1 // pred_region
      _
    $region9: #{recurrent_latent_encoder_forward.1} parent=1 // pred_fallthru
      _
    // Predicated region
    $region10: #{recurrent_latent_encoder_forward.1} parent=1 // pred_check
      _
    $region11: #{recurrent_latent_encoder_forward.1} parent=1 // pred_check_branch
      %14 = sbr.rel (0) target = $region13
    $region12: #{recurrent_latent_encoder_forward.1} parent=1 // pred_region
      %s16 = ssub.s32 3200, 3200
      %17 = vsyncadd [#allocation4], %s16
      %s18 = sshll.u32 [#allocation3], 4
      %s19 = int_to_ptr.vmem [resolvable:$true] %s18
      %24 = dma.hbm_to_vmem [thread:$0]  %s2, 3200, %s19, [#allocation4], 640, 640, 40
    $region13: #{recurrent_latent_encoder_forward.1} parent=1 // pred_fallthru
      _
    // Predicated region
    $region14: #{recurrent_latent_encoder_forward.1} parent=1 // pred_check
      _
    $region15: #{recurrent_latent_encoder_forward.1} parent=1 // pred_check_branch
      %26 = sbr.rel (0) target = $region17
    $region16: #{recurrent_latent_encoder_forward.1} parent=1 // pred_region
      %27 = dma.done [#allocation4], 3200
    $region17: #{recurrent_latent_encoder_forward.1} parent=1 // pred_fallthru
      _
    %v29 = vld [vmem:[#allocation3] sm:$0xff]
    %v30 = vld [vmem:[#allocation3 + $0x28] sm:$0xff]
    %v31 = vld [vmem:[#allocation3 + $0x50] sm:$0xf]
    %v32 = vpack.c.bf16 %v30, %v29
    %v33 = vpack.c.bf16 %v31, %v31
    %v34 = vld [vmem:[#allocation3 + $0xa0] ss:$0 sm:$0xff]
    %v35 = vld [vmem:[#allocation3 + $0x8] sm:$0xff]
    %v36 = vld [vmem:[#allocation3 + $0x30] sm:$0xff]
    %v37 = vld [vmem:[#allocation3 + $0x58] sm:$0xff]
    %v38 = vld [vmem:[#allocation3 + $0x80] sm:$0xff]
    %v39 = vpack.c.bf16 %v36, %v35
    %v40 = vpack.c.bf16 %v38, %v37
    %v41 = vld [vmem:[#allocation3 + $0xa8] ss:$0 sm:$0xff]
    %v42 = vld [vmem:[#allocation3 + $0x10] sm:$0xff]
    %v43 = vld [vmem:[#allocation3 + $0x38] sm:$0xff]
    %v44 = vld [vmem:[#allocation3 + $0x60] sm:$0xff]
    %v45 = vld [vmem:[#allocation3 + $0x88] sm:$0xff]
    %v46 = vld [vmem:[#allocation3 + $0x18] sm:$0xff]
    %v47 = vld [vmem:[#allocation3 + $0x40] sm:$0xff]
    %v48 = vld [vmem:[#allocation3 + $0x68] sm:$0xff]
    %v49 = vld [vmem:[#allocation3 + $0x90] sm:$0xff]
    %v50 = vld [vmem:[#allocation3 + $0xb8] ss:$0 sm:$0xff]
    %v51 = vld [vmem:[#allocation3 + $0x20] sm:$0xff]
    %v52 = vld [vmem:[#allocation3 + $0x48] sm:$0xff]
    %v53 = vld [vmem:[#allocation3 + $0x70] sm:$0xff]
    %v54 = vld [vmem:[#allocation3 + $0x98] sm:$0xff]
    %v55 = vld [vmem:[#allocation3 + $0xc0] ss:$0 sm:$0xff]
    %v56 = vld [vmem:[%s0] sm:$0xf]
    %v57 = vld [vmem:[%s0 + $0x4] sm:$0xf]
    %v58 = vld [vmem:[%s0 + $0x8] sm:$0xf]
    %v59 = vld [vmem:[%s0 + $0xc] sm:$0xf]
    %v60 = vld [vmem:[%s0 + $0x10] sm:$0xf]
    %v61 = vld [vmem:[%s0 + $0x14] sm:$0xf]
    %v62 = vld [vmem:[%s0 + $0x18] sm:$0xf]
    %v63 = vld [vmem:[%s0 + $0x1c] sm:$0xf]
    %v72 = vunpack.c.l.b16 %v56
    %v73 = vunpack.c.l.b16 %v57
    %v74 = vunpack.c.l.b16 %v58
    %v75 = vunpack.c.l.b16 %v59
    %v76 = vunpack.c.l.b16 %v60
    %v77 = vunpack.c.l.b16 %v61
    %v78 = vunpack.c.l.b16 %v62
    %v79 = vunpack.c.l.b16 %v63
    %v80 = vpack.c.b16 %v73, %v72
    %v81 = vpack.c.b16 %v75, %v74
    %v82 = vpack.c.b16 %v77, %v76
    %v83 = vpack.c.b16 %v79, %v78
    %vm84 = vcmask 162816
    %v86 = vsel %vm84, %v80, 0
    %v89 = vsel %vm84, %v81, 0
    %v92 = vsel %vm84, %v82, 0
    %v95 = vsel %vm84, %v83, 0
    %vm97 = vcmask 1041408
    %v99 = vsel %vm97, %v33, 0
    %101 = vmatprep.subr.bf16.mxu0 0
    %102 = vmatpush1.bf16.msra.mxu0 0
    %103 = vmatprep.subr.bf16.mxu0 0
    %104 = vmatpush1.bf16.msra.mxu0 0
    %105 = vmatprep.subr.bf16.mxu0 0
    %106 = vmatpush1.bf16.msra.mxu0 0
    %107 = vmatprep.subr.bf16.mxu0 0
    %108 = vmatpush1.bf16.msra.mxu0 0
    %109 = vmatprep.subr.bf16.mxu0 0
    %110 = vmatpush1.bf16.msra.mxu0 0
    %111 = vmatprep.subr.bf16.mxu0 0
    %112 = vmatpush1.bf16.msra.mxu0 0
    %113 = vmatprep.subr.bf16.mxu0 0
    %114 = vmatpush1.bf16.msra.mxu0 %v99
    %115 = vmatprep.subr.bf16.mxu0 0
    %116 = vmatpush1.bf16.msra.mxu0 %v32
    %117 = vmatprep.subr.bf16.mxu0 0
    %118 = vmatpush2.bf16.msra.mxu0 0
    %119 = vmatprep.subr.bf16.mxu0 0
    %120 = vmatpush2.bf16.msra.mxu0 0
    %121 = vmatprep.subr.bf16.mxu0 0
    %122 = vmatpush2.bf16.msra.mxu0 0
    %123 = vmatprep.subr.bf16.mxu0 0
    %124 = vmatpush2.bf16.msra.mxu0 0
    %125 = vmatprep.subr.bf16.mxu0 0
    %126 = vmatpush2.bf16.msra.mxu0 0
    %127 = vmatprep.subr.bf16.mxu0 0
    %128 = vmatpush2.bf16.msra.mxu0 0
    %129 = vmatprep.subr.bf16.mxu0 0
    %130 = vmatpush2.bf16.msra.mxu0 0
    %131 = vmatprep.subr.bf16.mxu0 0
    %132 = vmatpush2.bf16.msra.mxu0 0
    %133 = vmatprep.mubr.bf16.mxu0 0
    %134 = vmatmul.mubr.bf16.gmra.mxu0 %v86
    %v135 = vpop.f32.mrf.mxu0
    %v136 = vadd.f32 %v34, %v135
    %v137 = vpop.f32.mrf.mxu0
    %v138 = vpop.f32.mrf.mxu0
    %v139 = vadd.f32 %v34, %v138
    %v140 = vpop.f32.mrf.mxu0
    %141 = vmatprep.mubr.bf16.mxu0 0
    %142 = vmatmul.mubr.bf16.gmra.mxu0 %v89
    %v143 = vpop.f32.mrf.mxu0
    %v144 = vadd.f32 %v34, %v143
    %v145 = vpop.f32.mrf.mxu0
    %v146 = vpop.f32.mrf.mxu0
    %v147 = vadd.f32 %v34, %v146
    %v148 = vpop.f32.mrf.mxu0
    %149 = vmatprep.mubr.bf16.mxu0 0
    %150 = vmatmul.mubr.bf16.gmra.mxu0 %v92
    %v151 = vpop.f32.mrf.mxu0
    %v152 = vadd.f32 %v34, %v151
    %v153 = vpop.f32.mrf.mxu0
    %v154 = vpop.f32.mrf.mxu0
    %v155 = vadd.f32 %v34, %v154
    %v156 = vpop.f32.mrf.mxu0
    %157 = vmatprep.mubr.bf16.mxu0 0
    %158 = vmatmul.mubr.bf16.gmra.mxu0 %v95
    %v159 = vpop.f32.mrf.mxu0
    %v160 = vadd.f32 %v34, %v159
    %v161 = vpop.f32.mrf.mxu0
    %v162 = vpop.f32.mrf.mxu0
    %v163 = vadd.f32 %v34, %v162
    %v164 = vpop.f32.mrf.mxu0
    %165 = vdwg.mxu0
    %v166 = vmax.f32 %v136, 0.0
    %v167 = vmax.f32 %v139, 0.0
    %v168 = vmax.f32 %v144, 0.0
    %v169 = vmax.f32 %v147, 0.0
    %v170 = vmax.f32 %v152, 0.0
    %v171 = vmax.f32 %v155, 0.0
    %v172 = vmax.f32 %v160, 0.0
    %v173 = vmax.f32 %v163, 0.0
    %v174 = vpack.c.bf16 %v167, %v166
    %v175 = vpack.c.bf16 %v169, %v168
    %v176 = vpack.c.bf16 %v171, %v170
    %v177 = vpack.c.bf16 %v173, %v172
    %vm178 = vcmask 261120
    %v180 = vsel %vm178, %v174, 0
    %v183 = vsel %vm178, %v175, 0
    %v186 = vsel %vm178, %v176, 0
    %v189 = vsel %vm178, %v177, 0
    %191 = vmatprep.subr.bf16.mxu0 0
    %192 = vmatpush1.bf16.msra.mxu0 0
    %193 = vmatprep.subr.bf16.mxu0 0
    %194 = vmatpush1.bf16.msra.mxu0 0
    %195 = vmatprep.subr.bf16.mxu0 0
    %196 = vmatpush1.bf16.msra.mxu0 0
    %197 = vmatprep.subr.bf16.mxu0 0
    %198 = vmatpush1.bf16.msra.mxu0 0
    %199 = vmatprep.subr.bf16.mxu0 0
    %200 = vmatpush1.bf16.msra.mxu0 0
    %201 = vmatprep.subr.bf16.mxu0 0
    %202 = vmatpush1.bf16.msra.mxu0 0
    %203 = vmatprep.subr.bf16.mxu0 0
    %204 = vmatpush1.bf16.msra.mxu0 %v40
    %205 = vmatprep.subr.bf16.mxu0 0
    %206 = vmatpush1.bf16.msra.mxu0 %v39
    %207 = vmatprep.subr.bf16.mxu0 0
    %208 = vmatpush2.bf16.msra.mxu0 0
    %209 = vmatprep.subr.bf16.mxu0 0
    %210 = vmatpush2.bf16.msra.mxu0 0
    %211 = vmatprep.subr.bf16.mxu0 0
    %212 = vmatpush2.bf16.msra.mxu0 0
    %213 = vmatprep.subr.bf16.mxu0 0
    %214 = vmatpush2.bf16.msra.mxu0 0
    %215 = vmatprep.subr.bf16.mxu0 0
    %216 = vmatpush2.bf16.msra.mxu0 0
    %217 = vmatprep.subr.bf16.mxu0 0
    %218 = vmatpush2.bf16.msra.mxu0 0
    %219 = vmatprep.subr.bf16.mxu0 0
    %220 = vmatpush2.bf16.msra.mxu0 0
    %221 = vmatprep.subr.bf16.mxu0 0
    %222 = vmatpush2.bf16.msra.mxu0 0
    %223 = vmatprep.mubr.bf16.mxu0 0
    %224 = vmatmul.mubr.bf16.gmra.mxu0 %v180
    %v225 = vpop.f32.mrf.mxu0
    %v226 = vadd.f32 %v41, %v225
    %v227 = vpop.f32.mrf.mxu0
    %v228 = vpop.f32.mrf.mxu0
    %v229 = vadd.f32 %v41, %v228
    %v230 = vpop.f32.mrf.mxu0
    %231 = vmatprep.mubr.bf16.mxu0 0
    %232 = vmatmul.mubr.bf16.gmra.mxu0 %v183
    %v233 = vpop.f32.mrf.mxu0
    %v234 = vadd.f32 %v41, %v233
    %v235 = vpop.f32.mrf.mxu0
    %v236 = vpop.f32.mrf.mxu0
    %v237 = vadd.f32 %v41, %v236
    %v238 = vpop.f32.mrf.mxu0
    %239 = vmatprep.mubr.bf16.mxu0 0
    %240 = vmatmul.mubr.bf16.gmra.mxu0 %v186
    %v241 = vpop.f32.mrf.mxu0
    %v242 = vadd.f32 %v41, %v241
    %v243 = vpop.f32.mrf.mxu0
    %v244 = vpop.f32.mrf.mxu0
    %v245 = vadd.f32 %v41, %v244
    %v246 = vpop.f32.mrf.mxu0
    %247 = vmatprep.mubr.bf16.mxu0 0
    %248 = vmatmul.mubr.bf16.gmra.mxu0 %v189
    %v249 = vpop.f32.mrf.mxu0
    %v250 = vadd.f32 %v41, %v249
    %v251 = vpop.f32.mrf.mxu0
    %v252 = vpop.f32.mrf.mxu0
    %v253 = vadd.f32 %v41, %v252
    %v254 = vpop.f32.mrf.mxu0
    %255 = vdwg.mxu0
    %256 = vst [vmem:[#allocation2] sm:$0xff] %v226
    %257 = vst [vmem:[#allocation2 + $0x8] sm:$0xff] %v229
    %258 = vst [vmem:[#allocation2 + $0x10] sm:$0xff] %v234
    %259 = vst [vmem:[#allocation2 + $0x18] sm:$0xff] %v237
    %260 = vst [vmem:[#allocation2 + $0x20] sm:$0xff] %v242
    %261 = vst [vmem:[#allocation2 + $0x28] sm:$0xff] %v245
    %262 = vst [vmem:[#allocation2 + $0x30] sm:$0xff] %v250
    %263 = vst [vmem:[#allocation2 + $0x38] sm:$0xff] %v253
    %v264 = vld [vmem:[%s1] sm:$0xff]
    %v265 = vld [vmem:[%s1 + $0x8] sm:$0xff]
    %v266 = vld [vmem:[#allocation2] sm:$0xff]
    %v268 = vsel %vm178, %v264, 0
    %270 = vmatprep.subr.mxu0 0.0
    %271 = vmatpush1.msra.mxu0 0.0
    %272 = vmatprep.subr.mxu0 0.0
    %273 = vmatpush1.msra.mxu0 0.0
    %274 = vmatprep.subr.mxu0 0.0
    %275 = vmatpush1.msra.mxu0 0.0
    %276 = vmatprep.subr.mxu0 0.0
    %277 = vmatpush1.msra.mxu0 0.0
    %278 = vmatprep.subr.mxu0 0.0
    %279 = vmatpush1.msra.mxu0 0.0
    %280 = vmatprep.subr.mxu0 0.0
    %281 = vmatpush1.msra.mxu0 0.0
    %282 = vmatprep.subr.mxu0 0.0
    %283 = vmatpush1.msra.mxu0 0.0
    %284 = vmatprep.subr.mxu0 0.0
    %285 = vmatpush1.msra.mxu0 0.0
    %286 = vmatprep.subr.mxu0 0.0
    %287 = vmatpush1.msra.mxu0 0.0
    %288 = vmatprep.subr.mxu0 0.0
    %289 = vmatpush1.msra.mxu0 0.0
    %290 = vmatprep.subr.mxu0 0.0
    %291 = vmatpush1.msra.mxu0 0.0
    %292 = vmatprep.subr.mxu0 0.0
    %293 = vmatpush1.msra.mxu0 0.0
    %294 = vmatprep.subr.mxu0 0.0
    %295 = vmatpush1.msra.mxu0 %v45
    %296 = vmatprep.subr.mxu0 0.0
    %297 = vmatpush1.msra.mxu0 %v44
    %298 = vmatprep.subr.mxu0 0.0
    %299 = vmatpush1.msra.mxu0 %v43
    %300 = vmatprep.subr.mxu0 0.0
    %301 = vmatpush1.msra.mxu0 %v42
    %302 = vmatprep.subr.mxu0 0.0
    %303 = vmatpush2.msra.mxu0 0.0
    %304 = vmatprep.subr.mxu0 0.0
    %305 = vmatpush2.msra.mxu0 0.0
    %306 = vmatprep.subr.mxu0 0.0
    %307 = vmatpush2.msra.mxu0 0.0
    %308 = vmatprep.subr.mxu0 0.0
    %309 = vmatpush2.msra.mxu0 0.0
    %310 = vmatprep.subr.mxu0 0.0
    %311 = vmatpush2.msra.mxu0 0.0
    %312 = vmatprep.subr.mxu0 0.0
    %313 = vmatpush2.msra.mxu0 0.0
    %314 = vmatprep.subr.mxu0 0.0
    %315 = vmatpush2.msra.mxu0 0.0
    %316 = vmatprep.subr.mxu0 0.0
    %317 = vmatpush2.msra.mxu0 0.0
    %318 = vmatprep.subr.mxu0 0.0
    %319 = vmatpush2.msra.mxu0 0.0
    %320 = vmatprep.subr.mxu0 0.0
    %321 = vmatpush2.msra.mxu0 0.0
    %322 = vmatprep.subr.mxu0 0.0
    %323 = vmatpush2.msra.mxu0 0.0
    %324 = vmatprep.subr.mxu0 0.0
    %325 = vmatpush2.msra.mxu0 0.0
    %326 = vmatprep.subr.mxu0 0.0
    %327 = vmatpush2.msra.mxu0 0.0
    %328 = vmatprep.subr.mxu0 0.0
    %329 = vmatpush2.msra.mxu0 0.0
    %330 = vmatprep.subr.mxu0 0.0
    %331 = vmatpush2.msra.mxu0 0.0
    %332 = vmatprep.subr.mxu0 0.0
    %333 = vmatpush2.msra.mxu0 0.0
    %334 = vmatprep.mubr.f32.mxu0 0.0
    %335 = vmatmul.mubr.f32.gmra.mxu0 %v268
    %v336 = vpop.f32.mrf.mxu0
    %v337 = vadd.f32 0.0, %v336
    %v338 = vpop.f32.mrf.mxu0
    %339 = vdwg.mxu0
    %v340 = vadd.f32 %v266, %v337
    %v341 = vxor.u32 %v340, 2147483648
    %v342 = vmul.f32 %v341, 1.442695
    %v343 = vpow.pop %v342
    %v344 = vadd.f32 %v343, 1.0
    %v345 = vrcp.pop %v344
    %v346 = vmul.f32 1.0, %v345
    %v347 = vtanh.pop %v340
    %349 = vrot.lane.b32.xlu0 %v265, 32
    %v350 = vpop.permute.xlu0 %349
    %v352 = vmul.f32 %v346, %v350
    %354 = vrot.lane.b32.xlu0 %v347, 32
    %v355 = vpop.permute.xlu0 %354
    %v357 = vmul.f32 %v346, %v355
    %359 = vrot.lane.b32.xlu0 %v357, 32
    %v360 = vpop.permute.xlu0 %359
    %v362 = vadd.f32 %v352, %v360
    %v363 = vtanh.pop %v362
    %365 = vrot.lane.b32.xlu0 %v363, 32
    %v366 = vpop.permute.xlu0 %365
    %v368 = vmul.f32 %v346, %v366
    %s369 = scalar_lea.vmem [#allocation2], 8
    %v370 = vld [vmem:[%s369] sm:$0xff]
    %372 = vrot.lane.b32.xlu0 %v368, 64
    %v373 = vpop.permute.xlu0 %372
    %v374 = vsel %vm178, %v373, 0
    %376 = vmatprep.subr.mxu0 0.0
    %377 = vmatpush1.msra.mxu0 0.0
    %378 = vmatprep.subr.mxu0 0.0
    %379 = vmatpush1.msra.mxu0 0.0
    %380 = vmatprep.subr.mxu0 0.0
    %381 = vmatpush1.msra.mxu0 0.0
    %382 = vmatprep.subr.mxu0 0.0
    %383 = vmatpush1.msra.mxu0 0.0
    %384 = vmatprep.subr.mxu0 0.0
    %385 = vmatpush1.msra.mxu0 0.0
    %386 = vmatprep.subr.mxu0 0.0
    %387 = vmatpush1.msra.mxu0 0.0
    %388 = vmatprep.subr.mxu0 0.0
    %389 = vmatpush1.msra.mxu0 0.0
    %390 = vmatprep.subr.mxu0 0.0
    %391 = vmatpush1.msra.mxu0 0.0
    %392 = vmatprep.subr.mxu0 0.0
    %393 = vmatpush1.msra.mxu0 0.0
    %394 = vmatprep.subr.mxu0 0.0
    %395 = vmatpush1.msra.mxu0 0.0
    %396 = vmatprep.subr.mxu0 0.0
    %397 = vmatpush1.msra.mxu0 0.0
    %398 = vmatprep.subr.mxu0 0.0
    %399 = vmatpush1.msra.mxu0 0.0
    %400 = vmatprep.subr.mxu0 0.0
    %401 = vmatpush1.msra.mxu0 %v45
    %402 = vmatprep.subr.mxu0 0.0
    %403 = vmatpush1.msra.mxu0 %v44
    %404 = vmatprep.subr.mxu0 0.0
    %405 = vmatpush1.msra.mxu0 %v43
    %406 = vmatprep.subr.mxu0 0.0
    %407 = vmatpush1.msra.mxu0 %v42
    %408 = vmatprep.subr.mxu0 0.0
    %409 = vmatpush2.msra.mxu0 0.0
    %410 = vmatprep.subr.mxu0 0.0
    %411 = vmatpush2.msra.mxu0 0.0
    %412 = vmatprep.subr.mxu0 0.0
    %413 = vmatpush2.msra.mxu0 0.0
    %414 = vmatprep.subr.mxu0 0.0
    %415 = vmatpush2.msra.mxu0 0.0
    %416 = vmatprep.subr.mxu0 0.0
    %417 = vmatpush2.msra.mxu0 0.0
    %418 = vmatprep.subr.mxu0 0.0
    %419 = vmatpush2.msra.mxu0 0.0
    %420 = vmatprep.subr.mxu0 0.0
    %421 = vmatpush2.msra.mxu0 0.0
    %422 = vmatprep.subr.mxu0 0.0
    %423 = vmatpush2.msra.mxu0 0.0
    %424 = vmatprep.subr.mxu0 0.0
    %425 = vmatpush2.msra.mxu0 0.0
    %426 = vmatprep.subr.mxu0 0.0
    %427 = vmatpush2.msra.mxu0 0.0
    %428 = vmatprep.subr.mxu0 0.0
    %429 = vmatpush2.msra.mxu0 0.0
    %430 = vmatprep.subr.mxu0 0.0
    %431 = vmatpush2.msra.mxu0 0.0
    %432 = vmatprep.subr.mxu0 0.0
    %433 = vmatpush2.msra.mxu0 0.0
    %434 = vmatprep.subr.mxu0 0.0
    %435 = vmatpush2.msra.mxu0 0.0
    %436 = vmatprep.subr.mxu0 0.0
    %437 = vmatpush2.msra.mxu0 0.0
    %438 = vmatprep.subr.mxu0 0.0
    %439 = vmatpush2.msra.mxu0 0.0
    %440 = vmatprep.mubr.f32.mxu0 0.0
    %441 = vmatmul.mubr.f32.gmra.mxu0 %v374
    %v442 = vpop.f32.mrf.mxu0
    %v443 = vadd.f32 0.0, %v442
    %v444 = vpop.f32.mrf.mxu0
    %445 = vdwg.mxu0
    %v446 = vadd.f32 %v370, %v443
    %v447 = vxor.u32 %v446, 2147483648
    %v448 = vmul.f32 %v447, 1.442695
    %v449 = vpow.pop %v448
    %v450 = vadd.f32 %v449, 1.0
    %v451 = vrcp.pop %v450
    %v452 = vmul.f32 1.0, %v451
    %v453 = vtanh.pop %v446
    %v454 = vmul.f32 %v452, %v362
    %456 = vrot.lane.b32.xlu0 %v453, 32
    %v457 = vpop.permute.xlu0 %456
    %v459 = vmul.f32 %v452, %v457
    %461 = vrot.lane.b32.xlu0 %v459, 32
    %v462 = vpop.permute.xlu0 %461
    %v464 = vadd.f32 %v454, %v462
    %v465 = vtanh.pop %v464
    %467 = vrot.lane.b32.xlu0 %v465, 32
    %v468 = vpop.permute.xlu0 %467
    %v470 = vmul.f32 %v452, %v468
    %s471 = scalar_lea.vmem [#allocation2], 16
    %v472 = vld [vmem:[%s471] sm:$0xff]
    %474 = vrot.lane.b32.xlu0 %v470, 64
    %v475 = vpop.permute.xlu0 %474
    %v476 = vsel %vm178, %v475, 0
    %478 = vmatprep.subr.mxu0 0.0
    %479 = vmatpush1.msra.mxu0 0.0
    %480 = vmatprep.subr.mxu0 0.0
    %481 = vmatpush1.msra.mxu0 0.0
    %482 = vmatprep.subr.mxu0 0.0
    %483 = vmatpush1.msra.mxu0 0.0
    %484 = vmatprep.subr.mxu0 0.0
    %485 = vmatpush1.msra.mxu0 0.0
    %486 = vmatprep.subr.mxu0 0.0
    %487 = vmatpush1.msra.mxu0 0.0
    %488 = vmatprep.subr.mxu0 0.0
    %489 = vmatpush1.msra.mxu0 0.0
    %490 = vmatprep.subr.mxu0 0.0
    %491 = vmatpush1.msra.mxu0 0.0
    %492 = vmatprep.subr.mxu0 0.0
    %493 = vmatpush1.msra.mxu0 0.0
    %494 = vmatprep.subr.mxu0 0.0
    %495 = vmatpush1.msra.mxu0 0.0
    %496 = vmatprep.subr.mxu0 0.0
    %497 = vmatpush1.msra.mxu0 0.0
    %498 = vmatprep.subr.mxu0 0.0
    %499 = vmatpush1.msra.mxu0 0.0
    %500 = vmatprep.subr.mxu0 0.0
    %501 = vmatpush1.msra.mxu0 0.0
    %502 = vmatprep.subr.mxu0 0.0
    %503 = vmatpush1.msra.mxu0 %v45
    %504 = vmatprep.subr.mxu0 0.0
    %505 = vmatpush1.msra.mxu0 %v44
    %506 = vmatprep.subr.mxu0 0.0
    %507 = vmatpush1.msra.mxu0 %v43
    %508 = vmatprep.subr.mxu0 0.0
    %509 = vmatpush1.msra.mxu0 %v42
    %510 = vmatprep.subr.mxu0 0.0
    %511 = vmatpush2.msra.mxu0 0.0
    %512 = vmatprep.subr.mxu0 0.0
    %513 = vmatpush2.msra.mxu0 0.0
    %514 = vmatprep.subr.mxu0 0.0
    %515 = vmatpush2.msra.mxu0 0.0
    %516 = vmatprep.subr.mxu0 0.0
    %517 = vmatpush2.msra.mxu0 0.0
    %518 = vmatprep.subr.mxu0 0.0
    %519 = vmatpush2.msra.mxu0 0.0
    %520 = vmatprep.subr.mxu0 0.0
    %521 = vmatpush2.msra.mxu0 0.0
    %522 = vmatprep.subr.mxu0 0.0
    %523 = vmatpush2.msra.mxu0 0.0
    %524 = vmatprep.subr.mxu0 0.0
    %525 = vmatpush2.msra.mxu0 0.0
    %526 = vmatprep.subr.mxu0 0.0
    %527 = vmatpush2.msra.mxu0 0.0
    %528 = vmatprep.subr.mxu0 0.0
    %529 = vmatpush2.msra.mxu0 0.0
    %530 = vmatprep.subr.mxu0 0.0
    %531 = vmatpush2.msra.mxu0 0.0
    %532 = vmatprep.subr.mxu0 0.0
    %533 = vmatpush2.msra.mxu0 0.0
    %534 = vmatprep.subr.mxu0 0.0
    %535 = vmatpush2.msra.mxu0 0.0
    %536 = vmatprep.subr.mxu0 0.0
    %537 = vmatpush2.msra.mxu0 0.0
    %538 = vmatprep.subr.mxu0 0.0
    %539 = vmatpush2.msra.mxu0 0.0
    %540 = vmatprep.subr.mxu0 0.0
    %541 = vmatpush2.msra.mxu0 0.0
    %542 = vmatprep.mubr.f32.mxu0 0.0
    %543 = vmatmul.mubr.f32.gmra.mxu0 %v476
    %v544 = vpop.f32.mrf.mxu0
    %v545 = vadd.f32 0.0, %v544
    %v546 = vpop.f32.mrf.mxu0
    %547 = vdwg.mxu0
    %v548 = vadd.f32 %v472, %v545
    %v549 = vxor.u32 %v548, 2147483648
    %v550 = vmul.f32 %v549, 1.442695
    %v551 = vpow.pop %v550
    %v552 = vadd.f32 %v551, 1.0
    %v553 = vrcp.pop %v552
    %v554 = vmul.f32 1.0, %v553
    %v555 = vtanh.pop %v548
    %v556 = vmul.f32 %v554, %v464
    %558 = vrot.lane.b32.xlu0 %v555, 32
    %v559 = vpop.permute.xlu0 %558
    %v561 = vmul.f32 %v554, %v559
    %563 = vrot.lane.b32.xlu0 %v561, 32
    %v564 = vpop.permute.xlu0 %563
    %v566 = vadd.f32 %v556, %v564
    %v567 = vtanh.pop %v566
    %569 = vrot.lane.b32.xlu0 %v567, 32
    %v570 = vpop.permute.xlu0 %569
    %v572 = vmul.f32 %v554, %v570
    %s573 = scalar_lea.vmem [#allocation2], 24
    %v574 = vld [vmem:[%s573] sm:$0xff]
    %576 = vrot.lane.b32.xlu0 %v572, 64
    %v577 = vpop.permute.xlu0 %576
    %v578 = vsel %vm178, %v577, 0
    %580 = vmatprep.subr.mxu0 0.0
    %581 = vmatpush1.msra.mxu0 0.0
    %582 = vmatprep.subr.mxu0 0.0
    %583 = vmatpush1.msra.mxu0 0.0
    %584 = vmatprep.subr.mxu0 0.0
    %585 = vmatpush1.msra.mxu0 0.0
    %586 = vmatprep.subr.mxu0 0.0
    %587 = vmatpush1.msra.mxu0 0.0
    %588 = vmatprep.subr.mxu0 0.0
    %589 = vmatpush1.msra.mxu0 0.0
    %590 = vmatprep.subr.mxu0 0.0
    %591 = vmatpush1.msra.mxu0 0.0
    %592 = vmatprep.subr.mxu0 0.0
    %593 = vmatpush1.msra.mxu0 0.0
    %594 = vmatprep.subr.mxu0 0.0
    %595 = vmatpush1.msra.mxu0 0.0
    %596 = vmatprep.subr.mxu0 0.0
    %597 = vmatpush1.msra.mxu0 0.0
    %598 = vmatprep.subr.mxu0 0.0
    %599 = vmatpush1.msra.mxu0 0.0
    %600 = vmatprep.subr.mxu0 0.0
    %601 = vmatpush1.msra.mxu0 0.0
    %602 = vmatprep.subr.mxu0 0.0
    %603 = vmatpush1.msra.mxu0 0.0
    %604 = vmatprep.subr.mxu0 0.0
    %605 = vmatpush1.msra.mxu0 %v45
    %606 = vmatprep.subr.mxu0 0.0
    %607 = vmatpush1.msra.mxu0 %v44
    %608 = vmatprep.subr.mxu0 0.0
    %609 = vmatpush1.msra.mxu0 %v43
    %610 = vmatprep.subr.mxu0 0.0
    %611 = vmatpush1.msra.mxu0 %v42
    %612 = vmatprep.subr.mxu0 0.0
    %613 = vmatpush2.msra.mxu0 0.0
    %614 = vmatprep.subr.mxu0 0.0
    %615 = vmatpush2.msra.mxu0 0.0
    %616 = vmatprep.subr.mxu0 0.0
    %617 = vmatpush2.msra.mxu0 0.0
    %618 = vmatprep.subr.mxu0 0.0
    %619 = vmatpush2.msra.mxu0 0.0
    %620 = vmatprep.subr.mxu0 0.0
    %621 = vmatpush2.msra.mxu0 0.0
    %622 = vmatprep.subr.mxu0 0.0
    %623 = vmatpush2.msra.mxu0 0.0
    %624 = vmatprep.subr.mxu0 0.0
    %625 = vmatpush2.msra.mxu0 0.0
    %626 = vmatprep.subr.mxu0 0.0
    %627 = vmatpush2.msra.mxu0 0.0
    %628 = vmatprep.subr.mxu0 0.0
    %629 = vmatpush2.msra.mxu0 0.0
    %630 = vmatprep.subr.mxu0 0.0
    %631 = vmatpush2.msra.mxu0 0.0
    %632 = vmatprep.subr.mxu0 0.0
    %633 = vmatpush2.msra.mxu0 0.0
    %634 = vmatprep.subr.mxu0 0.0
    %635 = vmatpush2.msra.mxu0 0.0
    %636 = vmatprep.subr.mxu0 0.0
    %637 = vmatpush2.msra.mxu0 0.0
    %638 = vmatprep.subr.mxu0 0.0
    %639 = vmatpush2.msra.mxu0 0.0
    %640 = vmatprep.subr.mxu0 0.0
    %641 = vmatpush2.msra.mxu0 0.0
    %642 = vmatprep.subr.mxu0 0.0
    %643 = vmatpush2.msra.mxu0 0.0
    %644 = vmatprep.mubr.f32.mxu0 0.0
    %645 = vmatmul.mubr.f32.gmra.mxu0 %v578
    %v646 = vpop.f32.mrf.mxu0
    %v647 = vadd.f32 0.0, %v646
    %v648 = vpop.f32.mrf.mxu0
    %649 = vdwg.mxu0
    %v650 = vadd.f32 %v574, %v647
    %v651 = vxor.u32 %v650, 2147483648
    %v652 = vmul.f32 %v651, 1.442695
    %v653 = vpow.pop %v652
    %v654 = vadd.f32 %v653, 1.0
    %v655 = vrcp.pop %v654
    %v656 = vmul.f32 1.0, %v655
    %v657 = vtanh.pop %v650
    %v658 = vmul.f32 %v656, %v566
    %660 = vrot.lane.b32.xlu0 %v657, 32
    %v661 = vpop.permute.xlu0 %660
    %v663 = vmul.f32 %v656, %v661
    %665 = vrot.lane.b32.xlu0 %v663, 32
    %v666 = vpop.permute.xlu0 %665
    %v668 = vadd.f32 %v658, %v666
    %v669 = vtanh.pop %v668
    %671 = vrot.lane.b32.xlu0 %v669, 32
    %v672 = vpop.permute.xlu0 %671
    %v674 = vmul.f32 %v656, %v672
    %s675 = scalar_lea.vmem [#allocation2], 32
    %v676 = vld [vmem:[%s675] sm:$0xff]
    %678 = vrot.lane.b32.xlu0 %v674, 64
    %v679 = vpop.permute.xlu0 %678
    %v680 = vsel %vm178, %v679, 0
    %682 = vmatprep.subr.mxu0 0.0
    %683 = vmatpush1.msra.mxu0 0.0
    %684 = vmatprep.subr.mxu0 0.0
    %685 = vmatpush1.msra.mxu0 0.0
    %686 = vmatprep.subr.mxu0 0.0
    %687 = vmatpush1.msra.mxu0 0.0
    %688 = vmatprep.subr.mxu0 0.0
    %689 = vmatpush1.msra.mxu0 0.0
    %690 = vmatprep.subr.mxu0 0.0
    %691 = vmatpush1.msra.mxu0 0.0
    %692 = vmatprep.subr.mxu0 0.0
    %693 = vmatpush1.msra.mxu0 0.0
    %694 = vmatprep.subr.mxu0 0.0
    %695 = vmatpush1.msra.mxu0 0.0
    %696 = vmatprep.subr.mxu0 0.0
    %697 = vmatpush1.msra.mxu0 0.0
    %698 = vmatprep.subr.mxu0 0.0
    %699 = vmatpush1.msra.mxu0 0.0
    %700 = vmatprep.subr.mxu0 0.0
    %701 = vmatpush1.msra.mxu0 0.0
    %702 = vmatprep.subr.mxu0 0.0
    %703 = vmatpush1.msra.mxu0 0.0
    %704 = vmatprep.subr.mxu0 0.0
    %705 = vmatpush1.msra.mxu0 0.0
    %706 = vmatprep.subr.mxu0 0.0
    %707 = vmatpush1.msra.mxu0 %v45
    %708 = vmatprep.subr.mxu0 0.0
    %709 = vmatpush1.msra.mxu0 %v44
    %710 = vmatprep.subr.mxu0 0.0
    %711 = vmatpush1.msra.mxu0 %v43
    %712 = vmatprep.subr.mxu0 0.0
    %713 = vmatpush1.msra.mxu0 %v42
    %714 = vmatprep.subr.mxu0 0.0
    %715 = vmatpush2.msra.mxu0 0.0
    %716 = vmatprep.subr.mxu0 0.0
    %717 = vmatpush2.msra.mxu0 0.0
    %718 = vmatprep.subr.mxu0 0.0
    %719 = vmatpush2.msra.mxu0 0.0
    %720 = vmatprep.subr.mxu0 0.0
    %721 = vmatpush2.msra.mxu0 0.0
    %722 = vmatprep.subr.mxu0 0.0
    %723 = vmatpush2.msra.mxu0 0.0
    %724 = vmatprep.subr.mxu0 0.0
    %725 = vmatpush2.msra.mxu0 0.0
    %726 = vmatprep.subr.mxu0 0.0
    %727 = vmatpush2.msra.mxu0 0.0
    %728 = vmatprep.subr.mxu0 0.0
    %729 = vmatpush2.msra.mxu0 0.0
    %730 = vmatprep.subr.mxu0 0.0
    %731 = vmatpush2.msra.mxu0 0.0
    %732 = vmatprep.subr.mxu0 0.0
    %733 = vmatpush2.msra.mxu0 0.0
    %734 = vmatprep.subr.mxu0 0.0
    %735 = vmatpush2.msra.mxu0 0.0
    %736 = vmatprep.subr.mxu0 0.0
    %737 = vmatpush2.msra.mxu0 0.0
    %738 = vmatprep.subr.mxu0 0.0
    %739 = vmatpush2.msra.mxu0 0.0
    %740 = vmatprep.subr.mxu0 0.0
    %741 = vmatpush2.msra.mxu0 0.0
    %742 = vmatprep.subr.mxu0 0.0
    %743 = vmatpush2.msra.mxu0 0.0
    %744 = vmatprep.subr.mxu0 0.0
    %745 = vmatpush2.msra.mxu0 0.0
    %746 = vmatprep.mubr.f32.mxu0 0.0
    %747 = vmatmul.mubr.f32.gmra.mxu0 %v680
    %v748 = vpop.f32.mrf.mxu0
    %v749 = vadd.f32 0.0, %v748
    %v750 = vpop.f32.mrf.mxu0
    %751 = vdwg.mxu0
    %v752 = vadd.f32 %v676, %v749
    %v753 = vxor.u32 %v752, 2147483648
    %v754 = vmul.f32 %v753, 1.442695
    %v755 = vpow.pop %v754
    %v756 = vadd.f32 %v755, 1.0
    %v757 = vrcp.pop %v756
    %v758 = vmul.f32 1.0, %v757
    %v759 = vtanh.pop %v752
    %v760 = vmul.f32 %v758, %v668
    %762 = vrot.lane.b32.xlu0 %v759, 32
    %v763 = vpop.permute.xlu0 %762
    %v765 = vmul.f32 %v758, %v763
    %767 = vrot.lane.b32.xlu0 %v765, 32
    %v768 = vpop.permute.xlu0 %767
    %v770 = vadd.f32 %v760, %v768
    %v771 = vtanh.pop %v770
    %773 = vrot.lane.b32.xlu0 %v771, 32
    %v774 = vpop.permute.xlu0 %773
    %v776 = vmul.f32 %v758, %v774
    %s777 = scalar_lea.vmem [#allocation2], 40
    %v778 = vld [vmem:[%s777] sm:$0xff]
    %780 = vrot.lane.b32.xlu0 %v776, 64
    %v781 = vpop.permute.xlu0 %780
    %v782 = vsel %vm178, %v781, 0
    %784 = vmatprep.subr.mxu0 0.0
    %785 = vmatpush1.msra.mxu0 0.0
    %786 = vmatprep.subr.mxu0 0.0
    %787 = vmatpush1.msra.mxu0 0.0
    %788 = vmatprep.subr.mxu0 0.0
    %789 = vmatpush1.msra.mxu0 0.0
    %790 = vmatprep.subr.mxu0 0.0
    %791 = vmatpush1.msra.mxu0 0.0
    %792 = vmatprep.subr.mxu0 0.0
    %793 = vmatpush1.msra.mxu0 0.0
    %794 = vmatprep.subr.mxu0 0.0
    %795 = vmatpush1.msra.mxu0 0.0
    %796 = vmatprep.subr.mxu0 0.0
    %797 = vmatpush1.msra.mxu0 0.0
    %798 = vmatprep.subr.mxu0 0.0
    %799 = vmatpush1.msra.mxu0 0.0
    %800 = vmatprep.subr.mxu0 0.0
    %801 = vmatpush1.msra.mxu0 0.0
    %802 = vmatprep.subr.mxu0 0.0
    %803 = vmatpush1.msra.mxu0 0.0
    %804 = vmatprep.subr.mxu0 0.0
    %805 = vmatpush1.msra.mxu0 0.0
    %806 = vmatprep.subr.mxu0 0.0
    %807 = vmatpush1.msra.mxu0 0.0
    %808 = vmatprep.subr.mxu0 0.0
    %809 = vmatpush1.msra.mxu0 %v45
    %810 = vmatprep.subr.mxu0 0.0
    %811 = vmatpush1.msra.mxu0 %v44
    %812 = vmatprep.subr.mxu0 0.0
    %813 = vmatpush1.msra.mxu0 %v43
    %814 = vmatprep.subr.mxu0 0.0
    %815 = vmatpush1.msra.mxu0 %v42
    %816 = vmatprep.subr.mxu0 0.0
    %817 = vmatpush2.msra.mxu0 0.0
    %818 = vmatprep.subr.mxu0 0.0
    %819 = vmatpush2.msra.mxu0 0.0
    %820 = vmatprep.subr.mxu0 0.0
    %821 = vmatpush2.msra.mxu0 0.0
    %822 = vmatprep.subr.mxu0 0.0
    %823 = vmatpush2.msra.mxu0 0.0
    %824 = vmatprep.subr.mxu0 0.0
    %825 = vmatpush2.msra.mxu0 0.0
    %826 = vmatprep.subr.mxu0 0.0
    %827 = vmatpush2.msra.mxu0 0.0
    %828 = vmatprep.subr.mxu0 0.0
    %829 = vmatpush2.msra.mxu0 0.0
    %830 = vmatprep.subr.mxu0 0.0
    %831 = vmatpush2.msra.mxu0 0.0
    %832 = vmatprep.subr.mxu0 0.0
    %833 = vmatpush2.msra.mxu0 0.0
    %834 = vmatprep.subr.mxu0 0.0
    %835 = vmatpush2.msra.mxu0 0.0
    %836 = vmatprep.subr.mxu0 0.0
    %837 = vmatpush2.msra.mxu0 0.0
    %838 = vmatprep.subr.mxu0 0.0
    %839 = vmatpush2.msra.mxu0 0.0
    %840 = vmatprep.subr.mxu0 0.0
    %841 = vmatpush2.msra.mxu0 0.0
    %842 = vmatprep.subr.mxu0 0.0
    %843 = vmatpush2.msra.mxu0 0.0
    %844 = vmatprep.subr.mxu0 0.0
    %845 = vmatpush2.msra.mxu0 0.0
    %846 = vmatprep.subr.mxu0 0.0
    %847 = vmatpush2.msra.mxu0 0.0
    %848 = vmatprep.mubr.f32.mxu0 0.0
    %849 = vmatmul.mubr.f32.gmra.mxu0 %v782
    %v850 = vpop.f32.mrf.mxu0
    %v851 = vadd.f32 0.0, %v850
    %v852 = vpop.f32.mrf.mxu0
    %853 = vdwg.mxu0
    %v854 = vadd.f32 %v778, %v851
    %v855 = vxor.u32 %v854, 2147483648
    %v856 = vmul.f32 %v855, 1.442695
    %v857 = vpow.pop %v856
    %v858 = vadd.f32 %v857, 1.0
    %v859 = vrcp.pop %v858
    %v860 = vmul.f32 1.0, %v859
    %v861 = vtanh.pop %v854
    %v862 = vmul.f32 %v860, %v770
    %864 = vrot.lane.b32.xlu0 %v861, 32
    %v865 = vpop.permute.xlu0 %864
    %v867 = vmul.f32 %v860, %v865
    %869 = vrot.lane.b32.xlu0 %v867, 32
    %v870 = vpop.permute.xlu0 %869
    %v872 = vadd.f32 %v862, %v870
    %v873 = vtanh.pop %v872
    %875 = vrot.lane.b32.xlu0 %v873, 32
    %v876 = vpop.permute.xlu0 %875
    %v878 = vmul.f32 %v860, %v876
    %s879 = scalar_lea.vmem [#allocation2], 48
    %v880 = vld [vmem:[%s879] sm:$0xff]
    %882 = vrot.lane.b32.xlu0 %v878, 64
    %v883 = vpop.permute.xlu0 %882
    %v884 = vsel %vm178, %v883, 0
    %886 = vmatprep.subr.mxu0 0.0
    %887 = vmatpush1.msra.mxu0 0.0
    %888 = vmatprep.subr.mxu0 0.0
    %889 = vmatpush1.msra.mxu0 0.0
    %890 = vmatprep.subr.mxu0 0.0
    %891 = vmatpush1.msra.mxu0 0.0
    %892 = vmatprep.subr.mxu0 0.0
    %893 = vmatpush1.msra.mxu0 0.0
    %894 = vmatprep.subr.mxu0 0.0
    %895 = vmatpush1.msra.mxu0 0.0
    %896 = vmatprep.subr.mxu0 0.0
    %897 = vmatpush1.msra.mxu0 0.0
    %898 = vmatprep.subr.mxu0 0.0
    %899 = vmatpush1.msra.mxu0 0.0
    %900 = vmatprep.subr.mxu0 0.0
    %901 = vmatpush1.msra.mxu0 0.0
    %902 = vmatprep.subr.mxu0 0.0
    %903 = vmatpush1.msra.mxu0 0.0
    %904 = vmatprep.subr.mxu0 0.0
    %905 = vmatpush1.msra.mxu0 0.0
    %906 = vmatprep.subr.mxu0 0.0
    %907 = vmatpush1.msra.mxu0 0.0
    %908 = vmatprep.subr.mxu0 0.0
    %909 = vmatpush1.msra.mxu0 0.0
    %910 = vmatprep.subr.mxu0 0.0
    %911 = vmatpush1.msra.mxu0 %v45
    %912 = vmatprep.subr.mxu0 0.0
    %913 = vmatpush1.msra.mxu0 %v44
    %914 = vmatprep.subr.mxu0 0.0
    %915 = vmatpush1.msra.mxu0 %v43
    %916 = vmatprep.subr.mxu0 0.0
    %917 = vmatpush1.msra.mxu0 %v42
    %918 = vmatprep.subr.mxu0 0.0
    %919 = vmatpush2.msra.mxu0 0.0
    %920 = vmatprep.subr.mxu0 0.0
    %921 = vmatpush2.msra.mxu0 0.0
    %922 = vmatprep.subr.mxu0 0.0
    %923 = vmatpush2.msra.mxu0 0.0
    %924 = vmatprep.subr.mxu0 0.0
    %925 = vmatpush2.msra.mxu0 0.0
    %926 = vmatprep.subr.mxu0 0.0
    %927 = vmatpush2.msra.mxu0 0.0
    %928 = vmatprep.subr.mxu0 0.0
    %929 = vmatpush2.msra.mxu0 0.0
    %930 = vmatprep.subr.mxu0 0.0
    %931 = vmatpush2.msra.mxu0 0.0
    %932 = vmatprep.subr.mxu0 0.0
    %933 = vmatpush2.msra.mxu0 0.0
    %934 = vmatprep.subr.mxu0 0.0
    %935 = vmatpush2.msra.mxu0 0.0
    %936 = vmatprep.subr.mxu0 0.0
    %937 = vmatpush2.msra.mxu0 0.0
    %938 = vmatprep.subr.mxu0 0.0
    %939 = vmatpush2.msra.mxu0 0.0
    %940 = vmatprep.subr.mxu0 0.0
    %941 = vmatpush2.msra.mxu0 0.0
    %942 = vmatprep.subr.mxu0 0.0
    %943 = vmatpush2.msra.mxu0 0.0
    %944 = vmatprep.subr.mxu0 0.0
    %945 = vmatpush2.msra.mxu0 0.0
    %946 = vmatprep.subr.mxu0 0.0
    %947 = vmatpush2.msra.mxu0 0.0
    %948 = vmatprep.subr.mxu0 0.0
    %949 = vmatpush2.msra.mxu0 0.0
    %950 = vmatprep.mubr.f32.mxu0 0.0
    %951 = vmatmul.mubr.f32.gmra.mxu0 %v884
    %v952 = vpop.f32.mrf.mxu0
    %v953 = vadd.f32 0.0, %v952
    %v954 = vpop.f32.mrf.mxu0
    %955 = vdwg.mxu0
    %v956 = vadd.f32 %v880, %v953
    %v957 = vxor.u32 %v956, 2147483648
    %v958 = vmul.f32 %v957, 1.442695
    %v959 = vpow.pop %v958
    %v960 = vadd.f32 %v959, 1.0
    %v961 = vrcp.pop %v960
    %v962 = vmul.f32 1.0, %v961
    %v963 = vtanh.pop %v956
    %v964 = vmul.f32 %v962, %v872
    %966 = vrot.lane.b32.xlu0 %v963, 32
    %v967 = vpop.permute.xlu0 %966
    %v969 = vmul.f32 %v962, %v967
    %971 = vrot.lane.b32.xlu0 %v969, 32
    %v972 = vpop.permute.xlu0 %971
    %v974 = vadd.f32 %v964, %v972
    %v975 = vtanh.pop %v974
    %977 = vrot.lane.b32.xlu0 %v975, 32
    %v978 = vpop.permute.xlu0 %977
    %v980 = vmul.f32 %v962, %v978
    %s981 = scalar_lea.vmem [#allocation2], 56
    %v982 = vld [vmem:[%s981] sm:$0xff]
    %984 = vrot.lane.b32.xlu0 %v980, 64
    %v985 = vpop.permute.xlu0 %984
    %v986 = vsel %vm178, %v985, 0
    %988 = vmatprep.subr.mxu0 0.0
    %989 = vmatpush1.msra.mxu0 0.0
    %990 = vmatprep.subr.mxu0 0.0
    %991 = vmatpush1.msra.mxu0 0.0
    %992 = vmatprep.subr.mxu0 0.0
    %993 = vmatpush1.msra.mxu0 0.0
    %994 = vmatprep.subr.mxu0 0.0
    %995 = vmatpush1.msra.mxu0 0.0
    %996 = vmatprep.subr.mxu0 0.0
    %997 = vmatpush1.msra.mxu0 0.0
    %998 = vmatprep.subr.mxu0 0.0
    %999 = vmatpush1.msra.mxu0 0.0
    %1000 = vmatprep.subr.mxu0 0.0
    %1001 = vmatpush1.msra.mxu0 0.0
    %1002 = vmatprep.subr.mxu0 0.0
    %1003 = vmatpush1.msra.mxu0 0.0
    %1004 = vmatprep.subr.mxu0 0.0
    %1005 = vmatpush1.msra.mxu0 0.0
    %1006 = vmatprep.subr.mxu0 0.0
    %1007 = vmatpush1.msra.mxu0 0.0
    %1008 = vmatprep.subr.mxu0 0.0
    %1009 = vmatpush1.msra.mxu0 0.0
    %1010 = vmatprep.subr.mxu0 0.0
    %1011 = vmatpush1.msra.mxu0 0.0
    %1012 = vmatprep.subr.mxu0 0.0
    %1013 = vmatpush1.msra.mxu0 %v45
    %1014 = vmatprep.subr.mxu0 0.0
    %1015 = vmatpush1.msra.mxu0 %v44
    %1016 = vmatprep.subr.mxu0 0.0
    %1017 = vmatpush1.msra.mxu0 %v43
    %1018 = vmatprep.subr.mxu0 0.0
    %1019 = vmatpush1.msra.mxu0 %v42
    %1020 = vmatprep.subr.mxu0 0.0
    %1021 = vmatpush2.msra.mxu0 0.0
    %1022 = vmatprep.subr.mxu0 0.0
    %1023 = vmatpush2.msra.mxu0 0.0
    %1024 = vmatprep.subr.mxu0 0.0
    %1025 = vmatpush2.msra.mxu0 0.0
    %1026 = vmatprep.subr.mxu0 0.0
    %1027 = vmatpush2.msra.mxu0 0.0
    %1028 = vmatprep.subr.mxu0 0.0
    %1029 = vmatpush2.msra.mxu0 0.0
    %1030 = vmatprep.subr.mxu0 0.0
    %1031 = vmatpush2.msra.mxu0 0.0
    %1032 = vmatprep.subr.mxu0 0.0
    %1033 = vmatpush2.msra.mxu0 0.0
    %1034 = vmatprep.subr.mxu0 0.0
    %1035 = vmatpush2.msra.mxu0 0.0
    %1036 = vmatprep.subr.mxu0 0.0
    %1037 = vmatpush2.msra.mxu0 0.0
    %1038 = vmatprep.subr.mxu0 0.0
    %1039 = vmatpush2.msra.mxu0 0.0
    %1040 = vmatprep.subr.mxu0 0.0
    %1041 = vmatpush2.msra.mxu0 0.0
    %1042 = vmatprep.subr.mxu0 0.0
    %1043 = vmatpush2.msra.mxu0 0.0
    %1044 = vmatprep.subr.mxu0 0.0
    %1045 = vmatpush2.msra.mxu0 0.0
    %1046 = vmatprep.subr.mxu0 0.0
    %1047 = vmatpush2.msra.mxu0 0.0
    %1048 = vmatprep.subr.mxu0 0.0
    %1049 = vmatpush2.msra.mxu0 0.0
    %1050 = vmatprep.subr.mxu0 0.0
    %1051 = vmatpush2.msra.mxu0 0.0
    %1052 = vmatprep.mubr.f32.mxu0 0.0
    %1053 = vmatmul.mubr.f32.gmra.mxu0 %v986
    %v1054 = vpop.f32.mrf.mxu0
    %v1055 = vadd.f32 0.0, %v1054
    %v1056 = vpop.f32.mrf.mxu0
    %1057 = vdwg.mxu0
    %v1058 = vadd.f32 %v982, %v1055
    %v1059 = vxor.u32 %v1058, 2147483648
    %v1060 = vmul.f32 %v1059, 1.442695
    %v1061 = vpow.pop %v1060
    %v1062 = vadd.f32 %v1061, 1.0
    %v1063 = vrcp.pop %v1062
    %v1064 = vmul.f32 1.0, %v1063
    %v1065 = vtanh.pop %v1058
    %v1066 = vmul.f32 %v1064, %v974
    %1068 = vrot.lane.b32.xlu0 %v1065, 32
    %v1069 = vpop.permute.xlu0 %1068
    %v1071 = vmul.f32 %v1064, %v1069
    %1073 = vrot.lane.b32.xlu0 %v1071, 32
    %v1074 = vpop.permute.xlu0 %1073
    %v1076 = vadd.f32 %v1066, %v1074
    %v1077 = vtanh.pop %v1076
    %1079 = vrot.lane.b32.xlu0 %v1077, 32
    %v1080 = vpop.permute.xlu0 %1079
    %v1082 = vmul.f32 %v1064, %v1080
    %1084 = vrot.lane.b32.xlu0 %v1082, 64
    %v1085 = vpop.permute.xlu0 %1084
    %v1086 = vsel %vm178, %v1085, 0
    %1088 = vmatprep.subr.mxu0 0.0
    %1089 = vmatpush1.msra.mxu0 0.0
    %1090 = vmatprep.subr.mxu0 0.0
    %1091 = vmatpush1.msra.mxu0 0.0
    %1092 = vmatprep.subr.mxu0 0.0
    %1093 = vmatpush1.msra.mxu0 0.0
    %1094 = vmatprep.subr.mxu0 0.0
    %1095 = vmatpush1.msra.mxu0 0.0
    %1096 = vmatprep.subr.mxu0 0.0
    %1097 = vmatpush1.msra.mxu0 0.0
    %1098 = vmatprep.subr.mxu0 0.0
    %1099 = vmatpush1.msra.mxu0 0.0
    %1100 = vmatprep.subr.mxu0 0.0
    %1101 = vmatpush1.msra.mxu0 0.0
    %1102 = vmatprep.subr.mxu0 0.0
    %1103 = vmatpush1.msra.mxu0 0.0
    %1104 = vmatprep.subr.mxu0 0.0
    %1105 = vmatpush1.msra.mxu0 0.0
    %1106 = vmatprep.subr.mxu0 0.0
    %1107 = vmatpush1.msra.mxu0 0.0
    %1108 = vmatprep.subr.mxu0 0.0
    %1109 = vmatpush1.msra.mxu0 0.0
    %1110 = vmatprep.subr.mxu0 0.0
    %1111 = vmatpush1.msra.mxu0 0.0
    %1112 = vmatprep.subr.mxu0 0.0
    %1113 = vmatpush1.msra.mxu0 %v49
    %1114 = vmatprep.subr.mxu0 0.0
    %1115 = vmatpush1.msra.mxu0 %v48
    %1116 = vmatprep.subr.mxu0 0.0
    %1117 = vmatpush1.msra.mxu0 %v47
    %1118 = vmatprep.subr.mxu0 0.0
    %1119 = vmatpush1.msra.mxu0 %v46
    %1120 = vmatprep.subr.mxu0 0.0
    %1121 = vmatpush2.msra.mxu0 0.0
    %1122 = vmatprep.subr.mxu0 0.0
    %1123 = vmatpush2.msra.mxu0 0.0
    %1124 = vmatprep.subr.mxu0 0.0
    %1125 = vmatpush2.msra.mxu0 0.0
    %1126 = vmatprep.subr.mxu0 0.0
    %1127 = vmatpush2.msra.mxu0 0.0
    %1128 = vmatprep.subr.mxu0 0.0
    %1129 = vmatpush2.msra.mxu0 0.0
    %1130 = vmatprep.subr.mxu0 0.0
    %1131 = vmatpush2.msra.mxu0 0.0
    %1132 = vmatprep.subr.mxu0 0.0
    %1133 = vmatpush2.msra.mxu0 0.0
    %1134 = vmatprep.subr.mxu0 0.0
    %1135 = vmatpush2.msra.mxu0 0.0
    %1136 = vmatprep.subr.mxu0 0.0
    %1137 = vmatpush2.msra.mxu0 0.0
    %1138 = vmatprep.subr.mxu0 0.0
    %1139 = vmatpush2.msra.mxu0 0.0
    %1140 = vmatprep.subr.mxu0 0.0
    %1141 = vmatpush2.msra.mxu0 0.0
    %1142 = vmatprep.subr.mxu0 0.0
    %1143 = vmatpush2.msra.mxu0 0.0
    %1144 = vmatprep.subr.mxu0 0.0
    %1145 = vmatpush2.msra.mxu0 0.0
    %1146 = vmatprep.subr.mxu0 0.0
    %1147 = vmatpush2.msra.mxu0 0.0
    %1148 = vmatprep.subr.mxu0 0.0
    %1149 = vmatpush2.msra.mxu0 0.0
    %1150 = vmatprep.subr.mxu0 0.0
    %1151 = vmatpush2.msra.mxu0 0.0
    %1152 = vmatprep.mubr.f32.mxu0 0.0
    %1153 = vmatmul.mubr.f32.gmra.mxu0 %v986
    %v1154 = vpop.f32.mrf.mxu0
    %v1155 = vadd.f32 %v50, %v1154
    %v1156 = vpop.f32.mrf.mxu0
    %1157 = vmatprep.mubr.f32.mxu0 0.0
    %1158 = vmatmul.mubr.f32.gmra.mxu0 %v1086
    %v1159 = vpop.f32.mrf.mxu0
    %v1160 = vadd.f32 %v50, %v1159
    %v1161 = vpop.f32.mrf.mxu0
    %1162 = vdwg.mxu0
    %v1163 = vmax.f32 %v1155, 0.0
    %v1164 = vmax.f32 %v1160, 0.0
    %v1166 = vsel %vm178, %v1163, 0
    %v1169 = vsel %vm178, %v1164, 0
    %1171 = vmatprep.subr.mxu0 0.0
    %1172 = vmatpush1.msra.mxu0 0.0
    %1173 = vmatprep.subr.mxu0 0.0
    %1174 = vmatpush1.msra.mxu0 0.0
    %1175 = vmatprep.subr.mxu0 0.0
    %1176 = vmatpush1.msra.mxu0 0.0
    %1177 = vmatprep.subr.mxu0 0.0
    %1178 = vmatpush1.msra.mxu0 0.0
    %1179 = vmatprep.subr.mxu0 0.0
    %1180 = vmatpush1.msra.mxu0 0.0
    %1181 = vmatprep.subr.mxu0 0.0
    %1182 = vmatpush1.msra.mxu0 0.0
    %1183 = vmatprep.subr.mxu0 0.0
    %1184 = vmatpush1.msra.mxu0 0.0
    %1185 = vmatprep.subr.mxu0 0.0
    %1186 = vmatpush1.msra.mxu0 0.0
    %1187 = vmatprep.subr.mxu0 0.0
    %1188 = vmatpush1.msra.mxu0 0.0
    %1189 = vmatprep.subr.mxu0 0.0
    %1190 = vmatpush1.msra.mxu0 0.0
    %1191 = vmatprep.subr.mxu0 0.0
    %1192 = vmatpush1.msra.mxu0 0.0
    %1193 = vmatprep.subr.mxu0 0.0
    %1194 = vmatpush1.msra.mxu0 0.0
    %1195 = vmatprep.subr.mxu0 0.0
    %1196 = vmatpush1.msra.mxu0 %v54
    %1197 = vmatprep.subr.mxu0 0.0
    %1198 = vmatpush1.msra.mxu0 %v53
    %1199 = vmatprep.subr.mxu0 0.0
    %1200 = vmatpush1.msra.mxu0 %v52
    %1201 = vmatprep.subr.mxu0 0.0
    %1202 = vmatpush1.msra.mxu0 %v51
    %1203 = vmatprep.subr.mxu0 0.0
    %1204 = vmatpush2.msra.mxu0 0.0
    %1205 = vmatprep.subr.mxu0 0.0
    %1206 = vmatpush2.msra.mxu0 0.0
    %1207 = vmatprep.subr.mxu0 0.0
    %1208 = vmatpush2.msra.mxu0 0.0
    %1209 = vmatprep.subr.mxu0 0.0
    %1210 = vmatpush2.msra.mxu0 0.0
    %1211 = vmatprep.subr.mxu0 0.0
    %1212 = vmatpush2.msra.mxu0 0.0
    %1213 = vmatprep.subr.mxu0 0.0
    %1214 = vmatpush2.msra.mxu0 0.0
    %1215 = vmatprep.subr.mxu0 0.0
    %1216 = vmatpush2.msra.mxu0 0.0
    %1217 = vmatprep.subr.mxu0 0.0
    %1218 = vmatpush2.msra.mxu0 0.0
    %1219 = vmatprep.subr.mxu0 0.0
    %1220 = vmatpush2.msra.mxu0 0.0
    %1221 = vmatprep.subr.mxu0 0.0
    %1222 = vmatpush2.msra.mxu0 0.0
    %1223 = vmatprep.subr.mxu0 0.0
    %1224 = vmatpush2.msra.mxu0 0.0
    %1225 = vmatprep.subr.mxu0 0.0
    %1226 = vmatpush2.msra.mxu0 0.0
    %1227 = vmatprep.subr.mxu0 0.0
    %1228 = vmatpush2.msra.mxu0 0.0
    %1229 = vmatprep.subr.mxu0 0.0
    %1230 = vmatpush2.msra.mxu0 0.0
    %1231 = vmatprep.subr.mxu0 0.0
    %1232 = vmatpush2.msra.mxu0 0.0
    %1233 = vmatprep.subr.mxu0 0.0
    %1234 = vmatpush2.msra.mxu0 0.0
    %1235 = vmatprep.mubr.f32.mxu0 0.0
    %1236 = vmatmul.mubr.f32.gmra.mxu0 %v1166
    %v1237 = vpop.f32.mrf.mxu0
    %v1238 = vadd.f32 %v55, %v1237
    %v1239 = vpop.f32.mrf.mxu0
    %1240 = vmatprep.mubr.f32.mxu0 0.0
    %1241 = vmatmul.mubr.f32.gmra.mxu0 %v1169
    %v1242 = vpop.f32.mrf.mxu0
    %v1243 = vadd.f32 %v55, %v1242
    %v1244 = vpop.f32.mrf.mxu0
    %1245 = vdwg.mxu0
    %v1246 = vlaneseq
    %v1247 = vand.u32 %v1246, 127
    %vm1248 = vcmp.ge.s32.totalorder %v1247, 8
    %v1249 = vmax.f32 %v1238, -20.0
    %v1250 = vmax.f32 %v1243, -20.0
    %v1251 = vmin.f32 %v1249, 2.0
    %v1252 = vmin.f32 %v1250, 2.0
    %v1253 = vsel %vm1248, %v1251, %v1238
    %v1254 = vsel %vm1248, %v1252, %v1243
    %1256 = vrot.lane.b32.xlu0 %v1076, 32
    %v1257 = vpop.permute.xlu0 %1256
    %1258 = vrot.lane.b32.xlu0 %v1082, 80
    %v1259 = vpop.permute.xlu0 %1258
    %1260 = vrot.lane.b32.xlu0 %v1257, 80
    %v1261 = vpop.permute.xlu0 %1260
    %vm1264 = vcmask 130048
    %v1265 = vsel %vm1264, %v1253, %v1259
    %v1266 = vsel %vm1264, %v1254, %v1261
    %vm1267 = vcmask 392192
    %v1268 = vsel %vm1267, %v1265, 0.0
    %v1269 = vsel %vm1267, %v1266, 0.0
    %1270 = vst [vmem:[%s3] sm:$0xff] %v1268
    %1271 = vst [vmem:[%s3 + $0x8] sm:$0xff] %v1269
    // Predicated region
    $region18: #{recurrent_latent_encoder_forward.1} parent=1 // pred_check
      _
    $region19: #{recurrent_latent_encoder_forward.1} parent=1 // pred_check_branch
      %1273 = sbr.rel (0) target = $region21
    $region20: #{recurrent_latent_encoder_forward.1} parent=1 // pred_region
      _
    $region21: #{recurrent_latent_encoder_forward.1} parent=1 // pred_fallthru
      _
    // Predicated region
    $region22: #{recurrent_latent_encoder_forward.1} parent=1 // pred_check
      _
    $region23: #{recurrent_latent_encoder_forward.1} parent=1 // pred_check_branch
      %1275 = sbr.rel (0) target = $region25
    $region24: #{recurrent_latent_encoder_forward.1} parent=1 // pred_region
      _
    $region25: #{recurrent_latent_encoder_forward.1} parent=1 // pred_fallthru
      _
    %1276 = vsyncpa [#allocation4], 1

</llo_original>
